<compile_context>
chip_gen: v6e
topology: v6e:2x2x1
jax: 0.10.0
libtpu: 0.0.40
codegen_flags: <defaults>
</compile_context>

<pallas_src>
import jax
import jax.numpy as jnp
from jax.experimental import pallas as pl
from jax.experimental.pallas import tpu as pltpu


def _gelu_tanh(x):
    # tanh-approximate GELU, computed in f32 (EUP tanh; safe on v5e too).
    # TODO(synk): PyTorch nn.GELU defaults to exact (erf) GELU; tanh approx
    # deviates by ~1e-3.  Swap in jax.scipy erf if exact parity is required.
    c = 0.7978845608028654  # sqrt(2/pi)
    return 0.5 * x * (1.0 + jnp.tanh(c * (x + 0.044715 * x * x * x)))


def residual_mlp_kernel(x_ref, w1_ref, b1_ref, w2_ref, b2_ref, o_ref):
    x = x_ref[...]                           # (TM, D) in the token I/O dtype (bf16 preferred)
    x_bf = x.astype(jnp.bfloat16)            # no-op when the token stream is already bf16

    # fn(x): Linear1 -> GELU -> Linear2, f32 accumulation on the MXU.
    h = jnp.dot(x_bf, w1_ref[...], preferred_element_type=jnp.float32)
    h = _gelu_tanh(h + b1_ref[...])          # f32 epilogue
    y = jnp.dot(h.astype(jnp.bfloat16), w2_ref[...],
                preferred_element_type=jnp.float32)
    y = y + b2_ref[...]

    # Residual: fn(x) + x  (accumulate in f32, cast once on store).
    o_ref[...] = (y + x.astype(jnp.float32)).astype(o_ref.dtype)


def residual_mlp(x, w1, b1, w2, b2, *, tm=1024):
    """x: [N, D] -> [N, D], computes MLP(x) + x fused in one Pallas kernel.

    Store weights in bf16 and biases as f32 (1, H)/(1, D) in model state so the
    .astype / .reshape below are no-ops on the hot path.
    """
    N, D = x.shape
    H = w1.shape[1]
    out_dtype = x.dtype
    itemsize = jnp.dtype(out_dtype).itemsize

    # Param prep (no-ops when params are already stored prepared).
    w1_bf = w1.astype(jnp.bfloat16)
    w2_bf = w2.astype(jnp.bfloat16)
    b1_f = b1.astype(jnp.float32).reshape(1, H)
    b2_f = b2.astype(jnp.float32).reshape(1, D)

    # Token tile: multiple of 256 (MXU M-dim on v6e/v7x, 2x128 on v5e),
    # capped at 2048 and at the (rounded-up) token count.  No host padding:
    # the boundary block is masked by Pallas.
    tm = int(max(256, min(tm, 2048)))
    tm = (tm // 256) * 256
    tm = min(tm, pl.cdiv(N, 256) * 256)
    grid = (pl.cdiv(N, tm),)

    # Advisory cost for XLA scheduling around the custom call (actual N bytes;
    # no pad/slice copies are triggered anymore).
    cost = pl.CostEstimate(
        flops=4 * N * D * H + 8 * N * H + 2 * N * D,
        transcendentals=N * H,
        bytes_accessed=(N * D * itemsize          # x in
                        + 2 * D * H * 2           # w1, w2 (bf16, VMEM-resident)
                        + (H + D) * 4             # biases (f32)
                        + N * D * itemsize),      # out
    )

    # Explicit VMEM budget: double-buffered x/out tiles + resident bf16 weights
    # + f32 intermediates.  Footprint is a few MiB even at tm=2048, so keep a
    # modest limit (<= 48 MiB) to leave Mosaic headroom on v7x's 64 MiB VMEM.
    vmem_bytes = (2 * 2 * tm * D * itemsize       # x + out, 2 buffers each
                  + 2 * D * H * 2                 # bf16 weights
                  + (H + D) * 4                   # biases
                  + tm * H * 4 + 2 * tm * D * 4)  # f32 temporaries
    vmem_limit = int(min(max(2 * vmem_bytes, 32 * 1024 * 1024),
                         48 * 1024 * 1024))

    return pl.pallas_call(
        residual_mlp_kernel,
        out_shape=jax.ShapeDtypeStruct((N, D), out_dtype),
        grid_spec=pltpu.PrefetchScalarGridSpec(
            num_scalar_prefetch=0,
            grid=grid,
            in_specs=[
                pl.BlockSpec((tm, D), lambda i: (i, 0)),   # x: tiled over tokens
                pl.BlockSpec((D, H), lambda i: (0, 0)),    # w1: VMEM-resident
                pl.BlockSpec((1, H), lambda i: (0, 0)),    # b1
                pl.BlockSpec((H, D), lambda i: (0, 0)),    # w2: VMEM-resident
                pl.BlockSpec((1, D), lambda i: (0, 0)),    # b2
            ],
            out_specs=pl.BlockSpec((tm, D), lambda i: (i, 0)),
        ),
        compiler_params=pltpu.CompilerParams(
            dimension_semantics=("parallel",),   # megacore sharding on v7x; neutral elsewhere
            vmem_limit_bytes=vmem_limit,
        ),
        cost_estimate=cost,
    )(x, w1_bf, b1_f, w2_bf, b2_f)


if __name__ == "__main__":
    # Small but lane-dense / MXU-aligned shapes for the wrapped MLP block:
    # batch=2, seq=200, hidden=128, mlp_hidden=256 -> N=400 tokens.
    # With tm=256 this gives grid=2 (exercises pipelining AND the masked
    # ragged boundary block: 256 + 144 valid rows).
    batch, seq, hidden, mlp_hidden = 2, 200, 128, 256

    key = jax.random.PRNGKey(0)
    kx, k1, k2, k3, k4 = jax.random.split(key, 5)

    # Token stream carried in bf16 at the HBM boundary (halves kernel I/O bytes).
    x = jax.random.normal(kx, (batch, seq, hidden), dtype=jnp.float32)
    x = x.astype(jnp.bfloat16)

    # Deterministic parameter init (PyTorch nn.Linear-style uniform bounds),
    # then converted ONCE to the "model state" formats (bf16 weights, f32
    # biases) so the wrapper's casts are no-ops on the hot path.
    bound1 = 1.0 / (hidden ** 0.5)
    bound2 = 1.0 / (mlp_hidden ** 0.5)
    w1 = jax.random.uniform(k1, (hidden, mlp_hidden), jnp.float32, -bound1, bound1)
    b1 = jax.random.uniform(k2, (mlp_hidden,), jnp.float32, -bound1, bound1)
    w2 = jax.random.uniform(k3, (mlp_hidden, hidden), jnp.float32, -bound2, bound2)
    b2 = jax.random.uniform(k4, (hidden,), jnp.float32, -bound2, bound2)
    w1_bf = w1.astype(jnp.bfloat16)
    w2_bf = w2.astype(jnp.bfloat16)

    # Flatten tokens: [batch, seq, hidden] -> [N, hidden]  (glue in plain JAX).
    x2d = x.reshape(batch * seq, hidden)

    out2d = residual_mlp(x2d, w1_bf, b1, w2_bf, b2, tm=256)
    out = out2d.reshape(batch, seq, hidden)
    jax.block_until_ready(out)

    # Pure-JAX f32 reference of the same fn(x) + x using the same bf16 weights
    # / bf16 input (the model state).  Tolerance reflects bf16 MXU operands and
    # bf16 token I/O with f32 accumulation.
    x2d_f = x2d.astype(jnp.float32)
    ref2d = (jnp.dot(_gelu_tanh(jnp.dot(x2d_f, w1_bf.astype(jnp.float32)) + b1),
                     w2_bf.astype(jnp.float32)) + b2 + x2d_f)
    ref = ref2d.reshape(batch, seq, hidden)
    assert jnp.allclose(out.astype(jnp.float32), ref, atol=5e-2, rtol=5e-2), \
        "mismatch vs reference"

    print("KERNEL_OK")
</pallas_src>

<mosaic_0001>
module attributes {stable_mosaic.version = 11 : i64} {
  func.func @residual_mlp_kernel(%arg0: i32, %arg1: memref<256x128xbf16, #tpu.memory_space<vmem>>, %arg2: memref<128x256xbf16, #tpu.memory_space<vmem>>, %arg3: memref<1x256xf32, #tpu.memory_space<vmem>>, %arg4: memref<256x128xbf16, #tpu.memory_space<vmem>>, %arg5: memref<1x128xf32, #tpu.memory_space<vmem>>, %arg6: memref<256x128xbf16, #tpu.memory_space<vmem>>) attributes {dimension_semantics = [#tpu.dimension_semantics<parallel>], iteration_bounds = array<i64: 2>, scalar_prefetch = 0 : i64, scratch_operands = 0 : i64, tpu.core_type = #tpu.core_type<tc>, window_params = [{transform_indices = @transform_0, window_bounds = array<i64: 256, 128>}, {pipeline_mode = #tpu.pipeline_mode<synchronous>, transform_indices = @transform_1, window_bounds = array<i64: 128, 256>}, {pipeline_mode = #tpu.pipeline_mode<synchronous>, transform_indices = @transform_2, window_bounds = array<i64: 1, 256>}, {pipeline_mode = #tpu.pipeline_mode<synchronous>, transform_indices = @transform_3, window_bounds = array<i64: 256, 128>}, {pipeline_mode = #tpu.pipeline_mode<synchronous>, transform_indices = @transform_4, window_bounds = array<i64: 1, 128>}, {transform_indices = @transform_5, window_bounds = array<i64: 256, 128>}]} {
    %c0 = arith.constant 0 : index
    %c0_0 = arith.constant 0 : index
    %0 = vector.load %arg1[%c0, %c0_0] : memref<256x128xbf16, #tpu.memory_space<vmem>>, vector<256x128xbf16>
    %c0_1 = arith.constant 0 : index
    %c0_2 = arith.constant 0 : index
    %1 = vector.load %arg2[%c0_1, %c0_2] : memref<128x256xbf16, #tpu.memory_space<vmem>>, vector<128x256xbf16>
    %cst = arith.constant dense<0.000000e+00> : vector<256x256xf32>
    %2 = tpu.matmul %0, %1, %cst {dimension_numbers = #tpu.dot_dimension_numbers<[1], [0], [0], [1], [0, 0, 1, 1], [], []>} : vector<256x128xbf16>, vector<128x256xbf16>, vector<256x256xf32> -> vector<256x256xf32>
    %c0_3 = arith.constant 0 : index
    %c0_4 = arith.constant 0 : index
    %3 = vector.load %arg3[%c0_3, %c0_4] : memref<1x256xf32, #tpu.memory_space<vmem>>, vector<1x256xf32>
    %4 = vector.broadcast %3 : vector<1x256xf32> to vector<256x256xf32>
    %5 = arith.addf %2, %4 : vector<256x256xf32>
    %cst_5 = arith.constant 5.000000e-01 : f32
    %6 = vector.broadcast %cst_5 : f32 to vector<256x256xf32>
    %7 = arith.mulf %6, %5 : vector<256x256xf32>
    %cst_6 = arith.constant 4.471500e-02 : f32
    %8 = vector.broadcast %cst_6 : f32 to vector<256x256xf32>
    %9 = arith.mulf %8, %5 : vector<256x256xf32>
    %10 = arith.mulf %9, %5 : vector<256x256xf32>
    %11 = arith.mulf %10, %5 : vector<256x256xf32>
    %12 = arith.addf %5, %11 : vector<256x256xf32>
    %cst_7 = arith.constant 0.797884583 : f32
    %13 = vector.broadcast %cst_7 : f32 to vector<256x256xf32>
    %14 = arith.mulf %13, %12 : vector<256x256xf32>
    %15 = math.tanh %14 : vector<256x256xf32>
    %cst_8 = arith.constant 1.000000e+00 : f32
    %16 = vector.broadcast %cst_8 : f32 to vector<256x256xf32>
    %17 = arith.addf %16, %15 : vector<256x256xf32>
    %18 = arith.mulf %7, %17 : vector<256x256xf32>
    %19 = arith.truncf %18 : vector<256x256xf32> to vector<256x256xbf16>
    %c0_9 = arith.constant 0 : index
    %c0_10 = arith.constant 0 : index
    %20 = vector.load %arg4[%c0_9, %c0_10] : memref<256x128xbf16, #tpu.memory_space<vmem>>, vector<256x128xbf16>
    %cst_11 = arith.constant dense<0.000000e+00> : vector<256x128xf32>
    %21 = tpu.matmul %19, %20, %cst_11 {dimension_numbers = #tpu.dot_dimension_numbers<[1], [0], [0], [1], [0, 0, 1, 1], [], []>} : vector<256x256xbf16>, vector<256x128xbf16>, vector<256x128xf32> -> vector<256x128xf32>
    %c0_12 = arith.constant 0 : index
    %c0_13 = arith.constant 0 : index
    %22 = vector.load %arg5[%c0_12, %c0_13] : memref<1x128xf32, #tpu.memory_space<vmem>>, vector<1x128xf32>
    %23 = vector.broadcast %22 : vector<1x128xf32> to vector<256x128xf32>
    %24 = arith.addf %21, %23 : vector<256x128xf32>
    %25 = arith.extf %0 : vector<256x128xbf16> to vector<256x128xf32>
    %26 = arith.addf %24, %25 : vector<256x128xf32>
    %27 = arith.truncf %26 : vector<256x128xf32> to vector<256x128xbf16>
    %c0_14 = arith.constant 0 : index
    %c0_15 = arith.constant 0 : index
    %28 = vector.load %arg6[%c0_14, %c0_15] : memref<256x128xbf16, #tpu.memory_space<vmem>>, vector<256x128xbf16>
    tpu.vector_store %arg6[%c0_14, %c0_15], %27 {strides = array<i32>} : memref<256x128xbf16, #tpu.memory_space<vmem>>, vector<256x128xbf16>,
    return
  }
  func.func @transform_0(%arg0: i32) -> (i32, i32) {
    %c0_i32 = arith.constant 0 : i32
    %c0_i32_0 = arith.constant 0 : i32
    return %arg0, %c0_i32 : i32, i32
  }
  func.func @transform_1(%arg0: i32) -> (i32, i32) {
    %c0_i32 = arith.constant 0 : i32
    %c0_i32_0 = arith.constant 0 : i32
    %c0_i32_1 = arith.constant 0 : i32
    return %c0_i32, %c0_i32_0 : i32, i32
  }
  func.func @transform_2(%arg0: i32) -> (i32, i32) {
    %c0_i32 = arith.constant 0 : i32
    %c0_i32_0 = arith.constant 0 : i32
    %c0_i32_1 = arith.constant 0 : i32
    return %c0_i32, %c0_i32_0 : i32, i32
  }
  func.func @transform_3(%arg0: i32) -> (i32, i32) {
    %c0_i32 = arith.constant 0 : i32
    %c0_i32_0 = arith.constant 0 : i32
    %c0_i32_1 = arith.constant 0 : i32
    return %c0_i32, %c0_i32_0 : i32, i32
  }
  func.func @transform_4(%arg0: i32) -> (i32, i32) {
    %c0_i32 = arith.constant 0 : i32
    %c0_i32_0 = arith.constant 0 : i32
    %c0_i32_1 = arith.constant 0 : i32
    return %c0_i32, %c0_i32_0 : i32, i32
  }
  func.func @transform_5(%arg0: i32) -> (i32, i32) {
    %c0_i32 = arith.constant 0 : i32
    %c0_i32_0 = arith.constant 0 : i32
    return %arg0, %c0_i32 : i32, i32
  }
}

</mosaic_0001>

<llo_original>
// kernel: tpu_custom_call.1
$region0: #{tpu_custom_call.1}
  #allocation0 [shape = 'u32[]', space=smem, size = 0x4, offset = 0x4, fixed_abs, tag = 'smem constant byte address 0x4 - core index']
  #allocation1 [shape = 'u32[144,128]{1,0:T(1,128)}', space=vmem, size = 0x12000, scoped, tag = 'internal scratch']
  %s0 = inlined_call_operand.hbm [shape: bf16[400,128], index: 0, kind: input, shape index: {}]
  %s1 = inlined_call_operand.hbm [shape: bf16[128,256], index: 1, kind: input, shape index: {}]
  %s2 = inlined_call_operand.vmem [shape: f32[1,256], index: 2, kind: input, shape index: {}]
  %s3 = inlined_call_operand.hbm [shape: bf16[256,128], index: 3, kind: input, shape index: {}]
  %s4 = inlined_call_operand.vmem [shape: f32[1,128], index: 4, kind: input, shape index: {}]
  %s5 = inlined_call_operand.hbm [shape: bf16[400,128], index: 5, kind: output, shape index: {}]
  %s6 = sld [smem:[#allocation0]]
  $region65: #{tpu_custom_call.1} parent=0
    _
  %s8 = ssub.s32 1, %s6
  %s9 = scalar_select 0, %s8, %s6
  $region1: #{tpu_custom_call.1} parent=0
    #allocation2 [shape = 'u8[131072]{0}', space=vmem, size = 0x20000, scoped, tag = 'input window, operand 0']
    #allocation3 [shape = 's32[2]{0}', space=sflag, size = 0x8, scoped, tag = 'scoped memory for tpu_custom_call.1']
    #allocation4 [shape = 's32[2]{0}', space=sflag, size = 0x8, scoped, tag = 'scoped memory for tpu_custom_call.1']
    #allocation5 [shape = 'u8[65536]{0}', space=vmem, size = 0x10000, scoped, tag = 'input window, operand 1, single buffered']
    #allocation6 [shape = 's32[1]{0}', space=sflag, size = 0x4, scoped, tag = 'scoped memory for tpu_custom_call.1']
    #allocation7 [shape = 'u8[65536]{0}', space=vmem, size = 0x10000, scoped, tag = 'input window, operand 3, single buffered']
    #allocation8 [shape = 'u8[131072]{0}', space=vmem, size = 0x20000, scoped, tag = 'output window, operand 0']
    %10 = vsyncpa [#allocation3], 0
    %s11 = scalar_lea.sflag [#allocation3], 1
    %12 = vsyncpa %s11, 0
    %13 = vsyncpa [#allocation6], 0
    %14 = vsyncpa [#allocation4], 0
    %s15 = scalar_lea.sflag [#allocation4], 1
    %16 = vsyncpa %s15, 0
    loop: start=0, step=1, limit=4
    $region2: #{tpu_custom_call.1} parent=1 // loop_pre_header
      _
    $region3: #{tpu_custom_call.1} parent=1 // loop_header
      %s18 = sphi 0, %s22
      %p19 = scmp.ge.s32.totalorder %s18, 4
      %s28 = sphi 0, %s30
      %s31 = sphi 0, %s28
      %s32 = sphi 0, %s31
      %s48 = sphi 0, %s32
      %s52 = sphi 0, %s52
      %s54 = sphi 0, %s52
      %s55 = sphi 0, %s54
      %s69 = sphi 0, %s55
      %s73 = sphi 0, %s73
      %s75 = sphi 0, %s73
      %s76 = sphi 0, %s75
      %s90 = sphi 0, %s76
      %s94 = sphi 0, %s94
      %s96 = sphi 0, %s94
      %s97 = sphi 0, %s96
      %s111 = sphi 0, %s97
      %s115 = sphi 0, %s115
      %s117 = sphi 0, %s115
      %s118 = sphi 0, %s117
      %s132 = sphi 0, %s118
      %s138 = sphi 0, %s140
      %s141 = sphi 0, %s138
      %s142 = sphi 0, %s141
      %s158 = sphi 0, %s142
    $region4: #{tpu_custom_call.1} parent=1 // loop_header_branch
      %21 = sbr.rel (%p19) target = $region8
    $region5: #{tpu_custom_call.1} parent=1 // loop_body
      %s23 = ssub.s32 %s18, 1
      %s24 = ssub.s32 %s18, 2
      %s25 = sadd.s32 %s18, 1
      %s26 = ssub.s32 %s18, %s25
      %p27 = scmp.eq.s32.totalorder %s26, 0
      %s29 = sadd.s32 %s28, 1
      %s30 = scalar_select %p27, %s28, %s29
      %p33 = pneg %p27
      %p34 = scmp.eq.s32.totalorder %s18, 1
      %p35 = por %p33, %p34
      %p36 = scmp.ne.s32.totalorder %s28, %s31
      %p37 = scmp.eq.s32.totalorder %s18, 0
      %p38 = por %p36, %p37
      %p39 = scmp.ne.s32.totalorder %s28, %s31
      %p40 = scmp.eq.s32.totalorder %s23, 1
      %p41 = por %p39, %p40
      %p42 = scmp.ne.s32.totalorder %s31, %s32
      %p43 = scmp.eq.s32.totalorder %s23, 0
      %p44 = por %p42, %p43
      %p45 = scmp.ne.s32.totalorder %s31, %s32
      %p46 = scmp.eq.s32.totalorder %s24, 1
      %p47 = por %p45, %p46
      %p49 = scmp.ne.s32.totalorder %s32, %s48
      %p50 = scmp.eq.s32.totalorder %s24, 0
      %p51 = por %p49, %p50
      %s53 = sadd.s32 %s52, 1
      %p56 = scmp.eq.s32.totalorder %s18, 1
      %p57 = scmp.ne.s32.totalorder %s52, %s54
      %p58 = scmp.eq.s32.totalorder %s18, 0
      %p59 = por %p57, %p58
      %p60 = scmp.ne.s32.totalorder %s52, %s54
      %p61 = scmp.eq.s32.totalorder %s23, 1
      %p62 = por %p60, %p61
      %p63 = scmp.ne.s32.totalorder %s54, %s55
      %p64 = scmp.eq.s32.totalorder %s23, 0
      %p65 = por %p63, %p64
      %p66 = scmp.ne.s32.totalorder %s54, %s55
      %p67 = scmp.eq.s32.totalorder %s24, 1
      %p68 = por %p66, %p67
      %p70 = scmp.ne.s32.totalorder %s55, %s69
      %p71 = scmp.eq.s32.totalorder %s24, 0
      %p72 = por %p70, %p71
      %s74 = sadd.s32 %s73, 1
      %p77 = scmp.eq.s32.totalorder %s18, 1
      %p78 = scmp.ne.s32.totalorder %s73, %s75
      %p79 = scmp.eq.s32.totalorder %s18, 0
      %p80 = por %p78, %p79
      %p81 = scmp.ne.s32.totalorder %s73, %s75
      %p82 = scmp.eq.s32.totalorder %s23, 1
      %p83 = por %p81, %p82
      %p84 = scmp.ne.s32.totalorder %s75, %s76
      %p85 = scmp.eq.s32.totalorder %s23, 0
      %p86 = por %p84, %p85
      %p87 = scmp.ne.s32.totalorder %s75, %s76
      %p88 = scmp.eq.s32.totalorder %s24, 1
      %p89 = por %p87, %p88
      %p91 = scmp.ne.s32.totalorder %s76, %s90
      %p92 = scmp.eq.s32.totalorder %s24, 0
      %p93 = por %p91, %p92
      %s95 = sadd.s32 %s94, 1
      %p98 = scmp.eq.s32.totalorder %s18, 1
      %p99 = scmp.ne.s32.totalorder %s94, %s96
      %p100 = scmp.eq.s32.totalorder %s18, 0
      %p101 = por %p99, %p100
      %p102 = scmp.ne.s32.totalorder %s94, %s96
      %p103 = scmp.eq.s32.totalorder %s23, 1
      %p104 = por %p102, %p103
      %p105 = scmp.ne.s32.totalorder %s96, %s97
      %p106 = scmp.eq.s32.totalorder %s23, 0
      %p107 = por %p105, %p106
      %p108 = scmp.ne.s32.totalorder %s96, %s97
      %p109 = scmp.eq.s32.totalorder %s24, 1
      %p110 = por %p108, %p109
      %p112 = scmp.ne.s32.totalorder %s97, %s111
      %p113 = scmp.eq.s32.totalorder %s24, 0
      %p114 = por %p112, %p113
      %s116 = sadd.s32 %s115, 1
      %p119 = scmp.eq.s32.totalorder %s18, 1
      %p120 = scmp.ne.s32.totalorder %s115, %s117
      %p121 = scmp.eq.s32.totalorder %s18, 0
      %p122 = por %p120, %p121
      %p123 = scmp.ne.s32.totalorder %s115, %s117
      %p124 = scmp.eq.s32.totalorder %s23, 1
      %p125 = por %p123, %p124
      %p126 = scmp.ne.s32.totalorder %s117, %s118
      %p127 = scmp.eq.s32.totalorder %s23, 0
      %p128 = por %p126, %p127
      %p129 = scmp.ne.s32.totalorder %s117, %s118
      %p130 = scmp.eq.s32.totalorder %s24, 1
      %p131 = por %p129, %p130
      %p133 = scmp.ne.s32.totalorder %s118, %s132
      %p134 = scmp.eq.s32.totalorder %s24, 0
      %p135 = por %p133, %p134
      %s136 = ssub.s32 %s18, %s25
      %p137 = scmp.eq.s32.totalorder %s136, 0
      %s139 = sadd.s32 %s138, 1
      %s140 = scalar_select %p137, %s138, %s139
      %p143 = pneg %p137
      %p144 = scmp.eq.s32.totalorder %s18, 1
      %p145 = por %p143, %p144
      %p146 = scmp.ne.s32.totalorder %s138, %s141
      %p147 = scmp.eq.s32.totalorder %s18, 0
      %p148 = por %p146, %p147
      %p149 = scmp.ne.s32.totalorder %s138, %s141
      %p150 = scmp.eq.s32.totalorder %s23, 1
      %p151 = por %p149, %p150
      %p152 = scmp.ne.s32.totalorder %s141, %s142
      %p153 = scmp.eq.s32.totalorder %s23, 0
      %p154 = por %p152, %p153
      %p155 = scmp.ne.s32.totalorder %s141, %s142
      %p156 = scmp.eq.s32.totalorder %s24, 1
      %p157 = por %p155, %p156
      %p159 = scmp.ne.s32.totalorder %s142, %s158
      %p160 = scmp.eq.s32.totalorder %s24, 0
      %p161 = por %p159, %p160
      %p162 = scmp.le.s32.totalorder 1, %s18
      %p163 = scmp.lt.s32.totalorder %s18, 3
      %p164 = pnand %p162, %p163
      %p165 = pneg %p164
      // Predicated region
      $region9: #{tpu_custom_call.1} parent=5 // pred_check
        _
      $region10: #{tpu_custom_call.1} parent=5 // pred_check_branch
        %167 = sbr.rel (%p164) target = $region12
      $region11: #{tpu_custom_call.1} parent=5 // pred_region
        %s168 = ssub.s32 %s18, 1
        // Predicated region
        $region13: #{tpu_custom_call.1} parent=11 // pred_check
          %p169 = pneg %p65
        $region14: #{tpu_custom_call.1} parent=11 // pred_check_branch
          %171 = sbr.rel (%p169) target = $region16
        $region15: #{tpu_custom_call.1} parent=11 // pred_region
          %s173 = ssub.s32 2048, 2048
          %174 = vsyncadd [#allocation6], %s173
          %s175 = sshll.u32 [#allocation5], 4
          %s176 = int_to_ptr.vmem [resolvable:$true] %s175
          %181 = dma.hbm_to_vmem [thread:$0]  %s1, 2048, %s176, [#allocation6], 128, 128, 8
        $region16: #{tpu_custom_call.1} parent=11 // pred_fallthru
          _
        // Predicated region
        $region17: #{tpu_custom_call.1} parent=11 // pred_check
          %p182 = pneg %p86
        $region18: #{tpu_custom_call.1} parent=11 // pred_check_branch
          %184 = sbr.rel (%p182) target = $region20
        $region19: #{tpu_custom_call.1} parent=11 // pred_region
          _
        $region20: #{tpu_custom_call.1} parent=11 // pred_fallthru
          _
        // Predicated region
        $region21: #{tpu_custom_call.1} parent=11 // pred_check
          %p185 = pneg %p107
        $region22: #{tpu_custom_call.1} parent=11 // pred_check_branch
          %187 = sbr.rel (%p185) target = $region24
        $region23: #{tpu_custom_call.1} parent=11 // pred_region
          %s189 = ssub.s32 2048, 2048
          %190 = vsyncadd [#allocation6], %s189
          %s191 = sshll.u32 [#allocation7], 4
          %s192 = int_to_ptr.vmem [resolvable:$true] %s191
          %197 = dma.hbm_to_vmem [thread:$0]  %s3, 2048, %s192, [#allocation6], 64, 64, 4
        $region24: #{tpu_custom_call.1} parent=11 // pred_fallthru
          _
        // Predicated region
        $region25: #{tpu_custom_call.1} parent=11 // pred_check
          %p198 = pneg %p128
        $region26: #{tpu_custom_call.1} parent=11 // pred_check_branch
          %200 = sbr.rel (%p198) target = $region28
        $region27: #{tpu_custom_call.1} parent=11 // pred_region
          _
        $region28: #{tpu_custom_call.1} parent=11 // pred_fallthru
          _
      $region12: #{tpu_custom_call.1} parent=5 // pred_fallthru
        _
      %p201 = scmp.lt.s32.totalorder %s18, 2
      // Predicated region
      $region29: #{tpu_custom_call.1} parent=5 // pred_check
        %p202 = pneg %p201
      $region30: #{tpu_custom_call.1} parent=5 // pred_check_branch
        %204 = sbr.rel (%p202) target = $region32
      $region31: #{tpu_custom_call.1} parent=5 // pred_region
        // Predicated region
        $region33: #{tpu_custom_call.1} parent=31 // pred_check
          %p205 = pneg %p38
        $region34: #{tpu_custom_call.1} parent=31 // pred_check_branch
          %207 = sbr.rel (%p205) target = $region36
        $region35: #{tpu_custom_call.1} parent=31 // pred_region
          %s208 = sand.u32 %s28, 1
          %s209 = scalar_lea.sflag [#allocation3], %s208
          %s210 = sand.u32 %s28, 1
          %s211 = smul.addr %s210, 128
          %s212 = scalar_lea.vmem [#allocation2], %s211
          %s213 = smul.u32 32, %s18
          %s214 = ssub.s32 50, %s213
          %p215 = scmp.lt.s32.totalorder %s214, 32
          %s216 = scalar_select %p215, %s214, 32
          %s217 = smul.u32 64, %s216
          %s219 = ssub.s32 2048, %s217
          %220 = vsyncadd %s209, %s219
          %p221 = scmp.ne.s32.totalorder 0, %s217
          %s222 = smul.addr %s213, 64
          %s223 = scalar_lea.hbm %s0, %s222
          %s224 = smul.u32 4, %s216
          %s225 = sshll.u32 %s212, 4
          %s226 = int_to_ptr.vmem [resolvable:$true] %s225
          %s227 = sshll.u32 %s224, 4
          %231 = dma.hbm_to_vmem [thread:$0]  (%p221), %s223, %s227, %s226, %s209, 64, 64, 4
        $region36: #{tpu_custom_call.1} parent=31 // pred_fallthru
          _
      $region32: #{tpu_custom_call.1} parent=5 // pred_fallthru
        _
      %p232 = scmp.le.s32.totalorder 1, %s18
      %p233 = scmp.lt.s32.totalorder %s18, 3
      %p234 = pnand %p232, %p233
      %p235 = pneg %p234
      // Predicated region
      $region37: #{tpu_custom_call.1} parent=5 // pred_check
        _
      $region38: #{tpu_custom_call.1} parent=5 // pred_check_branch
        %237 = sbr.rel (%p234) target = $region40
      $region39: #{tpu_custom_call.1} parent=5 // pred_region
        %s238 = ssub.s32 %s18, 1
        %s239 = sand.u32 %s31, 1
        %s240 = scalar_lea.sflag [#allocation3], %s239
        %s241 = sand.u32 %s31, 1
        %s242 = smul.addr %s241, 128
        %s243 = scalar_lea.vmem [#allocation2], %s242
        // Predicated region
        $region41: #{tpu_custom_call.1} parent=39 // pred_check
          %p244 = pneg %p44
        $region42: #{tpu_custom_call.1} parent=39 // pred_check_branch
          %246 = sbr.rel (%p244) target = $region44
        $region43: #{tpu_custom_call.1} parent=39 // pred_region
          %247 = dma.done %s240, 2048
        $region44: #{tpu_custom_call.1} parent=39 // pred_fallthru
          _
        // Predicated region
        $region45: #{tpu_custom_call.1} parent=39 // pred_check
          %p248 = pneg %p65
        $region46: #{tpu_custom_call.1} parent=39 // pred_check_branch
          %250 = sbr.rel (%p248) target = $region48
        $region47: #{tpu_custom_call.1} parent=39 // pred_region
          %251 = dma.done [#allocation6], 2048
        $region48: #{tpu_custom_call.1} parent=39 // pred_fallthru
          _
        // Predicated region
        $region49: #{tpu_custom_call.1} parent=39 // pred_check
          %p252 = pneg %p107
        $region50: #{tpu_custom_call.1} parent=39 // pred_check_branch
          %254 = sbr.rel (%p252) target = $region52
        $region51: #{tpu_custom_call.1} parent=39 // pred_region
          %255 = dma.done [#allocation6], 2048
        $region52: #{tpu_custom_call.1} parent=39 // pred_fallthru
          _
        %s256 = sand.u32 %s31, 1
        %s257 = scalar_lea.sflag [#allocation3], %s256
        %s258 = sand.u32 %s31, 1
        %s259 = smul.addr %s258, 128
        %s260 = scalar_lea.vmem [#allocation2], %s259
        %p261 = pneg %p44
        %p262 = pneg %p41
        %p263 = pneg %p65
        %p264 = pneg %p62
        %p265 = pneg %p86
        %p266 = pneg %p83
        %p267 = pneg %p107
        %p268 = pneg %p104
        %p269 = pneg %p128
        %p270 = pneg %p125
        %p271 = pneg %p154
        %p272 = pneg %p151
        %s273 = sand.u32 %s141, 1
        %s274 = scalar_lea.sflag [#allocation4], %s273
        %s275 = sand.u32 %s141, 1
        %s276 = smul.addr %s275, 128
        %s277 = scalar_lea.vmem [#allocation8], %s276
        %s278 = smul.u32 32, %s23
        %s279 = ssub.s32 50, %s278
        %p280 = scmp.lt.s32.totalorder %s279, 32
        %s281 = scalar_select %p280, %s279, 32
        %s282 = smul.u32 64, %s281
        %s283 = smul.u32 32, %s23
        %s284 = ssub.s32 50, %s283
        %p285 = scmp.lt.s32.totalorder %s284, 32
        %s286 = scalar_select %p285, %s284, 32
        %s287 = smul.u32 64, %s286
        %v289 = vld [vmem:[%s243] sm:$0xf]
        %v290 = vld [vmem:[%s243 + $0x4] sm:$0xf]
        %v291 = vld [vmem:[%s243 + $0x8] sm:$0xf]
        %v292 = vld [vmem:[%s243 + $0xc] sm:$0xf]
        %v293 = vld [vmem:[%s243 + $0x10] sm:$0xf]
        %v294 = vld [vmem:[%s243 + $0x14] sm:$0xf]
        %v295 = vld [vmem:[%s243 + $0x18] sm:$0xf]
        %v296 = vld [vmem:[%s243 + $0x1c] sm:$0xf]
        %v297 = vld [vmem:[%s243 + $0x20] sm:$0xf]
        %v298 = vld [vmem:[%s243 + $0x24] sm:$0xf]
        %v299 = vld [vmem:[%s243 + $0x28] sm:$0xf]
        %v300 = vld [vmem:[%s243 + $0x2c] sm:$0xf]
        %v301 = vld [vmem:[%s243 + $0x30] sm:$0xf]
        %v302 = vld [vmem:[%s243 + $0x34] sm:$0xf]
        %v303 = vld [vmem:[%s243 + $0x38] sm:$0xf]
        %v304 = vld [vmem:[%s243 + $0x3c] sm:$0xf]
        %v305 = vld [vmem:[%s243 + $0x40] sm:$0xf]
        %v306 = vld [vmem:[%s243 + $0x44] sm:$0xf]
        %v307 = vld [vmem:[%s243 + $0x48] sm:$0xf]
        %v308 = vld [vmem:[%s243 + $0x4c] sm:$0xf]
        %v309 = vld [vmem:[%s243 + $0x50] sm:$0xf]
        %v310 = vld [vmem:[%s243 + $0x54] sm:$0xf]
        %v311 = vld [vmem:[%s243 + $0x58] sm:$0xf]
        %v312 = vld [vmem:[%s243 + $0x5c] sm:$0xf]
        %v313 = vld [vmem:[%s243 + $0x60] sm:$0xf]
        %v314 = vld [vmem:[%s243 + $0x64] sm:$0xf]
        %v315 = vld [vmem:[%s243 + $0x68] sm:$0xf]
        %v316 = vld [vmem:[%s243 + $0x6c] sm:$0xf]
        %v317 = vld [vmem:[%s243 + $0x70] sm:$0xf]
        %v318 = vld [vmem:[%s243 + $0x74] sm:$0xf]
        %v319 = vld [vmem:[%s243 + $0x78] sm:$0xf]
        %v320 = vld [vmem:[%s243 + $0x7c] sm:$0xf]
        %v321 = vld [vmem:[#allocation5] sm:$0xff]
        %v322 = vld [vmem:[#allocation5 + $0x8] sm:$0xff]
        %v323 = vld [vmem:[#allocation5 + $0x10] sm:$0xff]
        %v324 = vld [vmem:[#allocation5 + $0x18] sm:$0xff]
        %v325 = vld [vmem:[#allocation5 + $0x20] sm:$0xff]
        %v326 = vld [vmem:[#allocation5 + $0x28] sm:$0xff]
        %v327 = vld [vmem:[#allocation5 + $0x30] sm:$0xff]
        %v328 = vld [vmem:[#allocation5 + $0x38] sm:$0xff]
        %v329 = vld [vmem:[#allocation5 + $0x40] sm:$0xff]
        %v330 = vld [vmem:[#allocation5 + $0x48] sm:$0xff]
        %v331 = vld [vmem:[#allocation5 + $0x50] sm:$0xff]
        %v332 = vld [vmem:[#allocation5 + $0x58] sm:$0xff]
        %v333 = vld [vmem:[#allocation5 + $0x60] sm:$0xff]
        %v334 = vld [vmem:[#allocation5 + $0x68] sm:$0xff]
        %v335 = vld [vmem:[#allocation5 + $0x70] sm:$0xff]
        %v336 = vld [vmem:[#allocation5 + $0x78] sm:$0xff]
        %v337 = vld [vmem:[%s2] sm:$0x3]
        %v339 = vlaneseq
        %v340 = vshrl.u32 %v339, 7
        %v341 = vsub.s32 0, %v340
        %v342 = vrot.slane %v337, %v341
        %v343 = vlaneseq
        %v344 = vshrl.u32 %v343, 7
        %v345 = vsub.s32 1, %v344
        %v346 = vrot.slane %v337, %v345
        %v381 = vunpack.c.l.b16 %v289
        %v382 = vunpack.c.l.b16 %v290
        %v383 = vunpack.c.l.b16 %v291
        %v384 = vunpack.c.l.b16 %v292
        %v385 = vunpack.c.l.b16 %v293
        %v386 = vunpack.c.l.b16 %v294
        %v387 = vunpack.c.l.b16 %v295
        %v388 = vunpack.c.l.b16 %v296
        %v389 = vunpack.c.l.b16 %v297
        %v390 = vunpack.c.l.b16 %v298
        %v391 = vunpack.c.l.b16 %v299
        %v392 = vunpack.c.l.b16 %v300
        %v393 = vunpack.c.l.b16 %v301
        %v394 = vunpack.c.l.b16 %v302
        %v395 = vunpack.c.l.b16 %v303
        %v396 = vunpack.c.l.b16 %v304
        %v397 = vunpack.c.l.b16 %v305
        %v398 = vunpack.c.l.b16 %v306
        %v399 = vunpack.c.l.b16 %v307
        %v400 = vunpack.c.l.b16 %v308
        %v401 = vunpack.c.l.b16 %v309
        %v402 = vunpack.c.l.b16 %v310
        %v403 = vunpack.c.l.b16 %v311
        %v404 = vunpack.c.l.b16 %v312
        %v405 = vunpack.c.l.b16 %v313
        %v406 = vunpack.c.l.b16 %v314
        %v407 = vunpack.c.l.b16 %v315
        %v408 = vunpack.c.l.b16 %v316
        %v409 = vunpack.c.l.b16 %v317
        %v410 = vunpack.c.l.b16 %v318
        %v411 = vunpack.c.l.b16 %v319
        %v412 = vunpack.c.l.b16 %v320
        %v413 = vpack.c.b16 %v382, %v381
        %v414 = vpack.c.b16 %v384, %v383
        %v415 = vpack.c.b16 %v386, %v385
        %v416 = vpack.c.b16 %v388, %v387
        %v417 = vpack.c.b16 %v390, %v389
        %v418 = vpack.c.b16 %v392, %v391
        %v419 = vpack.c.b16 %v394, %v393
        %v420 = vpack.c.b16 %v396, %v395
        %v421 = vpack.c.b16 %v398, %v397
        %v422 = vpack.c.b16 %v400, %v399
        %v423 = vpack.c.b16 %v402, %v401
        %v424 = vpack.c.b16 %v404, %v403
        %v425 = vpack.c.b16 %v406, %v405
        %v426 = vpack.c.b16 %v408, %v407
        %v427 = vpack.c.b16 %v410, %v409
        %v428 = vpack.c.b16 %v412, %v411
        %v461 = vunpack.c.l.b16 %v321
        %v462 = vunpack.c.h.b16 %v321
        %v463 = vunpack.c.l.b16 %v322
        %v464 = vunpack.c.h.b16 %v322
        %v465 = vunpack.c.l.b16 %v323
        %v466 = vunpack.c.h.b16 %v323
        %v467 = vunpack.c.l.b16 %v324
        %v468 = vunpack.c.h.b16 %v324
        %v469 = vunpack.c.l.b16 %v325
        %v470 = vunpack.c.h.b16 %v325
        %v471 = vunpack.c.l.b16 %v326
        %v472 = vunpack.c.h.b16 %v326
        %v473 = vunpack.c.l.b16 %v327
        %v474 = vunpack.c.h.b16 %v327
        %v475 = vunpack.c.l.b16 %v328
        %v476 = vunpack.c.h.b16 %v328
        %v477 = vunpack.c.l.b16 %v329
        %v478 = vunpack.c.h.b16 %v329
        %v479 = vunpack.c.l.b16 %v330
        %v480 = vunpack.c.h.b16 %v330
        %v481 = vunpack.c.l.b16 %v331
        %v482 = vunpack.c.h.b16 %v331
        %v483 = vunpack.c.l.b16 %v332
        %v484 = vunpack.c.h.b16 %v332
        %v485 = vunpack.c.l.b16 %v333
        %v486 = vunpack.c.h.b16 %v333
        %v487 = vunpack.c.l.b16 %v334
        %v488 = vunpack.c.h.b16 %v334
        %v489 = vunpack.c.l.b16 %v335
        %v490 = vunpack.c.h.b16 %v335
        %v491 = vunpack.c.l.b16 %v336
        %v492 = vunpack.c.h.b16 %v336
        %v493 = vpack.c.b16 %v463, %v461
        %v494 = vpack.c.b16 %v464, %v462
        %v495 = vpack.c.b16 %v467, %v465
        %v496 = vpack.c.b16 %v468, %v466
        %v497 = vpack.c.b16 %v471, %v469
        %v498 = vpack.c.b16 %v472, %v470
        %v499 = vpack.c.b16 %v475, %v473
        %v500 = vpack.c.b16 %v476, %v474
        %v501 = vpack.c.b16 %v479, %v477
        %v502 = vpack.c.b16 %v480, %v478
        %v503 = vpack.c.b16 %v483, %v481
        %v504 = vpack.c.b16 %v484, %v482
        %v505 = vpack.c.b16 %v487, %v485
        %v506 = vpack.c.b16 %v488, %v486
        %v507 = vpack.c.b16 %v491, %v489
        %v508 = vpack.c.b16 %v492, %v490
        %525 = vmatprep.subr.bf16.mxu0 %v508
        %526 = vmatpush1.bf16.msra.mxu0 %v507
        %527 = vmatprep.subr.bf16.mxu0 %v506
        %528 = vmatpush1.bf16.msra.mxu0 %v505
        %529 = vmatprep.subr.bf16.mxu0 %v504
        %530 = vmatpush1.bf16.msra.mxu0 %v503
        %531 = vmatprep.subr.bf16.mxu0 %v502
        %532 = vmatpush1.bf16.msra.mxu0 %v501
        %533 = vmatprep.subr.bf16.mxu0 %v500
        %534 = vmatpush1.bf16.msra.mxu0 %v499
        %535 = vmatprep.subr.bf16.mxu0 %v498
        %536 = vmatpush1.bf16.msra.mxu0 %v497
        %537 = vmatprep.subr.bf16.mxu0 %v496
        %538 = vmatpush1.bf16.msra.mxu0 %v495
        %539 = vmatprep.subr.bf16.mxu0 %v494
        %540 = vmatpush1.bf16.msra.mxu0 %v493
        %541 = vmatprep.subr.bf16.mxu0 0
        %542 = vmatpush2.bf16.msra.mxu0 0
        %543 = vmatprep.subr.bf16.mxu0 0
        %544 = vmatpush2.bf16.msra.mxu0 0
        %545 = vmatprep.subr.bf16.mxu0 0
        %546 = vmatpush2.bf16.msra.mxu0 0
        %547 = vmatprep.subr.bf16.mxu0 0
        %548 = vmatpush2.bf16.msra.mxu0 0
        %549 = vmatprep.subr.bf16.mxu0 0
        %550 = vmatpush2.bf16.msra.mxu0 0
        %551 = vmatprep.subr.bf16.mxu0 0
        %552 = vmatpush2.bf16.msra.mxu0 0
        %553 = vmatprep.subr.bf16.mxu0 0
        %554 = vmatpush2.bf16.msra.mxu0 0
        %555 = vmatprep.subr.bf16.mxu0 0
        %556 = vmatpush2.bf16.msra.mxu0 0
        %557 = vmatprep.mubr.bf16.mxu0 0
        %558 = vmatmul.mubr.bf16.gmra.mxu0 %v413
        %v559 = vpop.f32.mrf.mxu0
        %v560 = vadd.f32 %v342, %v559
        %v561 = vpop.f32.mrf.mxu0
        %v562 = vadd.f32 %v346, %v561
        %v563 = vpop.f32.mrf.mxu0
        %v564 = vadd.f32 %v342, %v563
        %v565 = vpop.f32.mrf.mxu0
        %v566 = vadd.f32 %v346, %v565
        %567 = vmatprep.mubr.bf16.mxu0 0
        %568 = vmatmul.mubr.bf16.gmra.mxu0 %v414
        %v569 = vpop.f32.mrf.mxu0
        %v570 = vadd.f32 %v342, %v569
        %v571 = vpop.f32.mrf.mxu0
        %v572 = vadd.f32 %v346, %v571
        %v573 = vpop.f32.mrf.mxu0
        %v574 = vadd.f32 %v342, %v573
        %v575 = vpop.f32.mrf.mxu0
        %v576 = vadd.f32 %v346, %v575
        %577 = vmatprep.mubr.bf16.mxu0 0
        %578 = vmatmul.mubr.bf16.gmra.mxu0 %v415
        %v579 = vpop.f32.mrf.mxu0
        %v580 = vadd.f32 %v342, %v579
        %v581 = vpop.f32.mrf.mxu0
        %v582 = vadd.f32 %v346, %v581
        %v583 = vpop.f32.mrf.mxu0
        %v584 = vadd.f32 %v342, %v583
        %v585 = vpop.f32.mrf.mxu0
        %v586 = vadd.f32 %v346, %v585
        %587 = vmatprep.mubr.bf16.mxu0 0
        %588 = vmatmul.mubr.bf16.gmra.mxu0 %v416
        %v589 = vpop.f32.mrf.mxu0
        %v590 = vadd.f32 %v342, %v589
        %v591 = vpop.f32.mrf.mxu0
        %v592 = vadd.f32 %v346, %v591
        %v593 = vpop.f32.mrf.mxu0
        %v594 = vadd.f32 %v342, %v593
        %v595 = vpop.f32.mrf.mxu0
        %v596 = vadd.f32 %v346, %v595
        %597 = vmatprep.mubr.bf16.mxu0 0
        %598 = vmatmul.mubr.bf16.gmra.mxu0 %v417
        %v599 = vpop.f32.mrf.mxu0
        %v600 = vadd.f32 %v342, %v599
        %v601 = vpop.f32.mrf.mxu0
        %v602 = vadd.f32 %v346, %v601
        %v603 = vpop.f32.mrf.mxu0
        %v604 = vadd.f32 %v342, %v603
        %v605 = vpop.f32.mrf.mxu0
        %v606 = vadd.f32 %v346, %v605
        %607 = vmatprep.mubr.bf16.mxu0 0
        %608 = vmatmul.mubr.bf16.gmra.mxu0 %v418
        %v609 = vpop.f32.mrf.mxu0
        %v610 = vadd.f32 %v342, %v609
        %v611 = vpop.f32.mrf.mxu0
        %v612 = vadd.f32 %v346, %v611
        %v613 = vpop.f32.mrf.mxu0
        %v614 = vadd.f32 %v342, %v613
        %v615 = vpop.f32.mrf.mxu0
        %v616 = vadd.f32 %v346, %v615
        %617 = vmatprep.mubr.bf16.mxu0 0
        %618 = vmatmul.mubr.bf16.gmra.mxu0 %v419
        %v619 = vpop.f32.mrf.mxu0
        %v620 = vadd.f32 %v342, %v619
        %v621 = vpop.f32.mrf.mxu0
        %v622 = vadd.f32 %v346, %v621
        %v623 = vpop.f32.mrf.mxu0
        %v624 = vadd.f32 %v342, %v623
        %v625 = vpop.f32.mrf.mxu0
        %v626 = vadd.f32 %v346, %v625
        %627 = vmatprep.mubr.bf16.mxu0 0
        %628 = vmatmul.mubr.bf16.gmra.mxu0 %v420
        %v629 = vpop.f32.mrf.mxu0
        %v630 = vadd.f32 %v342, %v629
        %v631 = vpop.f32.mrf.mxu0
        %v632 = vadd.f32 %v346, %v631
        %v633 = vpop.f32.mrf.mxu0
        %v634 = vadd.f32 %v342, %v633
        %v635 = vpop.f32.mrf.mxu0
        %v636 = vadd.f32 %v346, %v635
        %637 = vmatprep.mubr.bf16.mxu0 0
        %638 = vmatmul.mubr.bf16.gmra.mxu0 %v421
        %v639 = vpop.f32.mrf.mxu0
        %v640 = vadd.f32 %v342, %v639
        %v641 = vpop.f32.mrf.mxu0
        %v642 = vadd.f32 %v346, %v641
        %v643 = vpop.f32.mrf.mxu0
        %v644 = vadd.f32 %v342, %v643
        %v645 = vpop.f32.mrf.mxu0
        %v646 = vadd.f32 %v346, %v645
        %647 = vmatprep.mubr.bf16.mxu0 0
        %648 = vmatmul.mubr.bf16.gmra.mxu0 %v422
        %v649 = vpop.f32.mrf.mxu0
        %v650 = vadd.f32 %v342, %v649
        %v651 = vpop.f32.mrf.mxu0
        %v652 = vadd.f32 %v346, %v651
        %v653 = vpop.f32.mrf.mxu0
        %v654 = vadd.f32 %v342, %v653
        %v655 = vpop.f32.mrf.mxu0
        %v656 = vadd.f32 %v346, %v655
        %657 = vmatprep.mubr.bf16.mxu0 0
        %658 = vmatmul.mubr.bf16.gmra.mxu0 %v423
        %v659 = vpop.f32.mrf.mxu0
        %v660 = vadd.f32 %v342, %v659
        %v661 = vpop.f32.mrf.mxu0
        %v662 = vadd.f32 %v346, %v661
        %v663 = vpop.f32.mrf.mxu0
        %v664 = vadd.f32 %v342, %v663
        %v665 = vpop.f32.mrf.mxu0
        %v666 = vadd.f32 %v346, %v665
        %667 = vmatprep.mubr.bf16.mxu0 0
        %668 = vmatmul.mubr.bf16.gmra.mxu0 %v424
        %v669 = vpop.f32.mrf.mxu0
        %v670 = vadd.f32 %v342, %v669
        %v671 = vpop.f32.mrf.mxu0
        %v672 = vadd.f32 %v346, %v671
        %v673 = vpop.f32.mrf.mxu0
        %v674 = vadd.f32 %v342, %v673
        %v675 = vpop.f32.mrf.mxu0
        %v676 = vadd.f32 %v346, %v675
        %677 = vmatprep.mubr.bf16.mxu0 0
        %678 = vmatmul.mubr.bf16.gmra.mxu0 %v425
        %v679 = vpop.f32.mrf.mxu0
        %v680 = vadd.f32 %v342, %v679
        %v681 = vpop.f32.mrf.mxu0
        %v682 = vadd.f32 %v346, %v681
        %v683 = vpop.f32.mrf.mxu0
        %v684 = vadd.f32 %v342, %v683
        %v685 = vpop.f32.mrf.mxu0
        %v686 = vadd.f32 %v346, %v685
        %687 = vmatprep.mubr.bf16.mxu0 0
        %688 = vmatmul.mubr.bf16.gmra.mxu0 %v426
        %v689 = vpop.f32.mrf.mxu0
        %v690 = vadd.f32 %v342, %v689
        %v691 = vpop.f32.mrf.mxu0
        %v692 = vadd.f32 %v346, %v691
        %v693 = vpop.f32.mrf.mxu0
        %v694 = vadd.f32 %v342, %v693
        %v695 = vpop.f32.mrf.mxu0
        %v696 = vadd.f32 %v346, %v695
        %697 = vmatprep.mubr.bf16.mxu0 0
        %698 = vmatmul.mubr.bf16.gmra.mxu0 %v427
        %v699 = vpop.f32.mrf.mxu0
        %v700 = vadd.f32 %v342, %v699
        %v701 = vpop.f32.mrf.mxu0
        %v702 = vadd.f32 %v346, %v701
        %v703 = vpop.f32.mrf.mxu0
        %v704 = vadd.f32 %v342, %v703
        %v705 = vpop.f32.mrf.mxu0
        %v706 = vadd.f32 %v346, %v705
        %707 = vmatprep.mubr.bf16.mxu0 0
        %708 = vmatmul.mubr.bf16.gmra.mxu0 %v428
        %v709 = vpop.f32.mrf.mxu0
        %v710 = vadd.f32 %v342, %v709
        %v711 = vpop.f32.mrf.mxu0
        %v712 = vadd.f32 %v346, %v711
        %v713 = vpop.f32.mrf.mxu0
        %v714 = vadd.f32 %v342, %v713
        %v715 = vpop.f32.mrf.mxu0
        %v716 = vadd.f32 %v346, %v715
        %717 = vdwg.mxu0
        %v718 = vmul.f32 %v560, 0.5
        %v719 = vmul.f32 %v562, 0.5
        %v720 = vmul.f32 %v564, 0.5
        %v721 = vmul.f32 %v566, 0.5
        %v722 = vmul.f32 %v570, 0.5
        %v723 = vmul.f32 %v572, 0.5
        %v724 = vmul.f32 %v574, 0.5
        %v725 = vmul.f32 %v576, 0.5
        %v726 = vmul.f32 %v580, 0.5
        %v727 = vmul.f32 %v582, 0.5
        %v728 = vmul.f32 %v584, 0.5
        %v729 = vmul.f32 %v586, 0.5
        %v730 = vmul.f32 %v590, 0.5
        %v731 = vmul.f32 %v592, 0.5
        %v732 = vmul.f32 %v594, 0.5
        %v733 = vmul.f32 %v596, 0.5
        %v734 = vmul.f32 %v600, 0.5
        %v735 = vmul.f32 %v602, 0.5
        %v736 = vmul.f32 %v604, 0.5
        %v737 = vmul.f32 %v606, 0.5
        %v738 = vmul.f32 %v610, 0.5
        %v739 = vmul.f32 %v612, 0.5
        %v740 = vmul.f32 %v614, 0.5
        %v741 = vmul.f32 %v616, 0.5
        %v742 = vmul.f32 %v620, 0.5
        %v743 = vmul.f32 %v622, 0.5
        %v744 = vmul.f32 %v624, 0.5
        %v745 = vmul.f32 %v626, 0.5
        %v746 = vmul.f32 %v630, 0.5
        %v747 = vmul.f32 %v632, 0.5
        %v748 = vmul.f32 %v634, 0.5
        %v749 = vmul.f32 %v636, 0.5
        %v750 = vmul.f32 %v640, 0.5
        %v751 = vmul.f32 %v642, 0.5
        %v752 = vmul.f32 %v644, 0.5
        %v753 = vmul.f32 %v646, 0.5
        %v754 = vmul.f32 %v650, 0.5
        %v755 = vmul.f32 %v652, 0.5
        %v756 = vmul.f32 %v654, 0.5
        %v757 = vmul.f32 %v656, 0.5
        %v758 = vmul.f32 %v660, 0.5
        %v759 = vmul.f32 %v662, 0.5
        %v760 = vmul.f32 %v664, 0.5
        %v761 = vmul.f32 %v666, 0.5
        %v762 = vmul.f32 %v670, 0.5
        %v763 = vmul.f32 %v672, 0.5
        %v764 = vmul.f32 %v674, 0.5
        %v765 = vmul.f32 %v676, 0.5
        %v766 = vmul.f32 %v680, 0.5
        %v767 = vmul.f32 %v682, 0.5
        %v768 = vmul.f32 %v684, 0.5
        %v769 = vmul.f32 %v686, 0.5
        %v770 = vmul.f32 %v690, 0.5
        %v771 = vmul.f32 %v692, 0.5
        %v772 = vmul.f32 %v694, 0.5
        %v773 = vmul.f32 %v696, 0.5
        %v774 = vmul.f32 %v700, 0.5
        %v775 = vmul.f32 %v702, 0.5
        %v776 = vmul.f32 %v704, 0.5
        %v777 = vmul.f32 %v706, 0.5
        %v778 = vmul.f32 %v710, 0.5
        %v779 = vmul.f32 %v712, 0.5
        %v780 = vmul.f32 %v714, 0.5
        %v781 = vmul.f32 %v716, 0.5
        %v782 = vmul.f32 %v560, 0.044715
        %v783 = vmul.f32 %v562, 0.044715
        %v784 = vmul.f32 %v564, 0.044715
        %v785 = vmul.f32 %v566, 0.044715
        %v786 = vmul.f32 %v570, 0.044715
        %v787 = vmul.f32 %v572, 0.044715
        %v788 = vmul.f32 %v574, 0.044715
        %v789 = vmul.f32 %v576, 0.044715
        %v790 = vmul.f32 %v580, 0.044715
        %v791 = vmul.f32 %v582, 0.044715
        %v792 = vmul.f32 %v584, 0.044715
        %v793 = vmul.f32 %v586, 0.044715
        %v794 = vmul.f32 %v590, 0.044715
        %v795 = vmul.f32 %v592, 0.044715
        %v796 = vmul.f32 %v594, 0.044715
        %v797 = vmul.f32 %v596, 0.044715
        %v798 = vmul.f32 %v600, 0.044715
        %v799 = vmul.f32 %v602, 0.044715
        %v800 = vmul.f32 %v604, 0.044715
        %v801 = vmul.f32 %v606, 0.044715
        %v802 = vmul.f32 %v610, 0.044715
        %v803 = vmul.f32 %v612, 0.044715
        %v804 = vmul.f32 %v614, 0.044715
        %v805 = vmul.f32 %v616, 0.044715
        %v806 = vmul.f32 %v620, 0.044715
        %v807 = vmul.f32 %v622, 0.044715
        %v808 = vmul.f32 %v624, 0.044715
        %v809 = vmul.f32 %v626, 0.044715
        %v810 = vmul.f32 %v630, 0.044715
        %v811 = vmul.f32 %v632, 0.044715
        %v812 = vmul.f32 %v634, 0.044715
        %v813 = vmul.f32 %v636, 0.044715
        %v814 = vmul.f32 %v640, 0.044715
        %v815 = vmul.f32 %v642, 0.044715
        %v816 = vmul.f32 %v644, 0.044715
        %v817 = vmul.f32 %v646, 0.044715
        %v818 = vmul.f32 %v650, 0.044715
        %v819 = vmul.f32 %v652, 0.044715
        %v820 = vmul.f32 %v654, 0.044715
        %v821 = vmul.f32 %v656, 0.044715
        %v822 = vmul.f32 %v660, 0.044715
        %v823 = vmul.f32 %v662, 0.044715
        %v824 = vmul.f32 %v664, 0.044715
        %v825 = vmul.f32 %v666, 0.044715
        %v826 = vmul.f32 %v670, 0.044715
        %v827 = vmul.f32 %v672, 0.044715
        %v828 = vmul.f32 %v674, 0.044715
        %v829 = vmul.f32 %v676, 0.044715
        %v830 = vmul.f32 %v680, 0.044715
        %v831 = vmul.f32 %v682, 0.044715
        %v832 = vmul.f32 %v684, 0.044715
        %v833 = vmul.f32 %v686, 0.044715
        %v834 = vmul.f32 %v690, 0.044715
        %v835 = vmul.f32 %v692, 0.044715
        %v836 = vmul.f32 %v694, 0.044715
        %v837 = vmul.f32 %v696, 0.044715
        %v838 = vmul.f32 %v700, 0.044715
        %v839 = vmul.f32 %v702, 0.044715
        %v840 = vmul.f32 %v704, 0.044715
        %v841 = vmul.f32 %v706, 0.044715
        %v842 = vmul.f32 %v710, 0.044715
        %v843 = vmul.f32 %v712, 0.044715
        %v844 = vmul.f32 %v714, 0.044715
        %v845 = vmul.f32 %v716, 0.044715
        %v846 = vmul.f32 %v782, %v560
        %v847 = vmul.f32 %v783, %v562
        %v848 = vmul.f32 %v784, %v564
        %v849 = vmul.f32 %v785, %v566
        %v850 = vmul.f32 %v786, %v570
        %v851 = vmul.f32 %v787, %v572
        %v852 = vmul.f32 %v788, %v574
        %v853 = vmul.f32 %v789, %v576
        %v854 = vmul.f32 %v790, %v580
        %v855 = vmul.f32 %v791, %v582
        %v856 = vmul.f32 %v792, %v584
        %v857 = vmul.f32 %v793, %v586
        %v858 = vmul.f32 %v794, %v590
        %v859 = vmul.f32 %v795, %v592
        %v860 = vmul.f32 %v796, %v594
        %v861 = vmul.f32 %v797, %v596
        %v862 = vmul.f32 %v798, %v600
        %v863 = vmul.f32 %v799, %v602
        %v864 = vmul.f32 %v800, %v604
        %v865 = vmul.f32 %v801, %v606
        %v866 = vmul.f32 %v802, %v610
        %v867 = vmul.f32 %v803, %v612
        %v868 = vmul.f32 %v804, %v614
        %v869 = vmul.f32 %v805, %v616
        %v870 = vmul.f32 %v806, %v620
        %v871 = vmul.f32 %v807, %v622
        %v872 = vmul.f32 %v808, %v624
        %v873 = vmul.f32 %v809, %v626
        %v874 = vmul.f32 %v810, %v630
        %v875 = vmul.f32 %v811, %v632
        %v876 = vmul.f32 %v812, %v634
        %v877 = vmul.f32 %v813, %v636
        %v878 = vmul.f32 %v814, %v640
        %v879 = vmul.f32 %v815, %v642
        %v880 = vmul.f32 %v816, %v644
        %v881 = vmul.f32 %v817, %v646
        %v882 = vmul.f32 %v818, %v650
        %v883 = vmul.f32 %v819, %v652
        %v884 = vmul.f32 %v820, %v654
        %v885 = vmul.f32 %v821, %v656
        %v886 = vmul.f32 %v822, %v660
        %v887 = vmul.f32 %v823, %v662
        %v888 = vmul.f32 %v824, %v664
        %v889 = vmul.f32 %v825, %v666
        %v890 = vmul.f32 %v826, %v670
        %v891 = vmul.f32 %v827, %v672
        %v892 = vmul.f32 %v828, %v674
        %v893 = vmul.f32 %v829, %v676
        %v894 = vmul.f32 %v830, %v680
        %v895 = vmul.f32 %v831, %v682
        %v896 = vmul.f32 %v832, %v684
        %v897 = vmul.f32 %v833, %v686
        %v898 = vmul.f32 %v834, %v690
        %v899 = vmul.f32 %v835, %v692
        %v900 = vmul.f32 %v836, %v694
        %v901 = vmul.f32 %v837, %v696
        %v902 = vmul.f32 %v838, %v700
        %v903 = vmul.f32 %v839, %v702
        %v904 = vmul.f32 %v840, %v704
        %v905 = vmul.f32 %v841, %v706
        %v906 = vmul.f32 %v842, %v710
        %v907 = vmul.f32 %v843, %v712
        %v908 = vmul.f32 %v844, %v714
        %v909 = vmul.f32 %v845, %v716
        %v910 = vmul.f32 %v846, %v560
        %v911 = vmul.f32 %v847, %v562
        %v912 = vmul.f32 %v848, %v564
        %v913 = vmul.f32 %v849, %v566
        %v914 = vmul.f32 %v850, %v570
        %v915 = vmul.f32 %v851, %v572
        %v916 = vmul.f32 %v852, %v574
        %v917 = vmul.f32 %v853, %v576
        %v918 = vmul.f32 %v854, %v580
        %v919 = vmul.f32 %v855, %v582
        %v920 = vmul.f32 %v856, %v584
        %v921 = vmul.f32 %v857, %v586
        %v922 = vmul.f32 %v858, %v590
        %v923 = vmul.f32 %v859, %v592
        %v924 = vmul.f32 %v860, %v594
        %v925 = vmul.f32 %v861, %v596
        %v926 = vmul.f32 %v862, %v600
        %v927 = vmul.f32 %v863, %v602
        %v928 = vmul.f32 %v864, %v604
        %v929 = vmul.f32 %v865, %v606
        %v930 = vmul.f32 %v866, %v610
        %v931 = vmul.f32 %v867, %v612
        %v932 = vmul.f32 %v868, %v614
        %v933 = vmul.f32 %v869, %v616
        %v934 = vmul.f32 %v870, %v620
        %v935 = vmul.f32 %v871, %v622
        %v936 = vmul.f32 %v872, %v624
        %v937 = vmul.f32 %v873, %v626
        %v938 = vmul.f32 %v874, %v630
        %v939 = vmul.f32 %v875, %v632
        %v940 = vmul.f32 %v876, %v634
        %v941 = vmul.f32 %v877, %v636
        %v942 = vmul.f32 %v878, %v640
        %v943 = vmul.f32 %v879, %v642
        %v944 = vmul.f32 %v880, %v644
        %v945 = vmul.f32 %v881, %v646
        %v946 = vmul.f32 %v882, %v650
        %v947 = vmul.f32 %v883, %v652
        %v948 = vmul.f32 %v884, %v654
        %v949 = vmul.f32 %v885, %v656
        %v950 = vmul.f32 %v886, %v660
        %v951 = vmul.f32 %v887, %v662
        %v952 = vmul.f32 %v888, %v664
        %v953 = vmul.f32 %v889, %v666
        %v954 = vmul.f32 %v890, %v670
        %v955 = vmul.f32 %v891, %v672
        %v956 = vmul.f32 %v892, %v674
        %v957 = vmul.f32 %v893, %v676
        %v958 = vmul.f32 %v894, %v680
        %v959 = vmul.f32 %v895, %v682
        %v960 = vmul.f32 %v896, %v684
        %v961 = vmul.f32 %v897, %v686
        %v962 = vmul.f32 %v898, %v690
        %v963 = vmul.f32 %v899, %v692
        %v964 = vmul.f32 %v900, %v694
        %v965 = vmul.f32 %v901, %v696
        %v966 = vmul.f32 %v902, %v700
        %v967 = vmul.f32 %v903, %v702
        %v968 = vmul.f32 %v904, %v704
        %v969 = vmul.f32 %v905, %v706
        %v970 = vmul.f32 %v906, %v710
        %v971 = vmul.f32 %v907, %v712
        %v972 = vmul.f32 %v908, %v714
        %v973 = vmul.f32 %v909, %v716
        %v974 = vadd.f32 %v560, %v910
        %v975 = vadd.f32 %v562, %v911
        %v976 = vadd.f32 %v564, %v912
        %v977 = vadd.f32 %v566, %v913
        %v978 = vadd.f32 %v570, %v914
        %v979 = vadd.f32 %v572, %v915
        %v980 = vadd.f32 %v574, %v916
        %v981 = vadd.f32 %v576, %v917
        %v982 = vadd.f32 %v580, %v918
        %v983 = vadd.f32 %v582, %v919
        %v984 = vadd.f32 %v584, %v920
        %v985 = vadd.f32 %v586, %v921
        %v986 = vadd.f32 %v590, %v922
        %v987 = vadd.f32 %v592, %v923
        %v988 = vadd.f32 %v594, %v924
        %v989 = vadd.f32 %v596, %v925
        %v990 = vadd.f32 %v600, %v926
        %v991 = vadd.f32 %v602, %v927
        %v992 = vadd.f32 %v604, %v928
        %v993 = vadd.f32 %v606, %v929
        %v994 = vadd.f32 %v610, %v930
        %v995 = vadd.f32 %v612, %v931
        %v996 = vadd.f32 %v614, %v932
        %v997 = vadd.f32 %v616, %v933
        %v998 = vadd.f32 %v620, %v934
        %v999 = vadd.f32 %v622, %v935
        %v1000 = vadd.f32 %v624, %v936
        %v1001 = vadd.f32 %v626, %v937
        %v1002 = vadd.f32 %v630, %v938
        %v1003 = vadd.f32 %v632, %v939
        %v1004 = vadd.f32 %v634, %v940
        %v1005 = vadd.f32 %v636, %v941
        %v1006 = vadd.f32 %v640, %v942
        %v1007 = vadd.f32 %v642, %v943
        %v1008 = vadd.f32 %v644, %v944
        %v1009 = vadd.f32 %v646, %v945
        %v1010 = vadd.f32 %v650, %v946
        %v1011 = vadd.f32 %v652, %v947
        %v1012 = vadd.f32 %v654, %v948
        %v1013 = vadd.f32 %v656, %v949
        %v1014 = vadd.f32 %v660, %v950
        %v1015 = vadd.f32 %v662, %v951
        %v1016 = vadd.f32 %v664, %v952
        %v1017 = vadd.f32 %v666, %v953
        %v1018 = vadd.f32 %v670, %v954
        %v1019 = vadd.f32 %v672, %v955
        %v1020 = vadd.f32 %v674, %v956
        %v1021 = vadd.f32 %v676, %v957
        %v1022 = vadd.f32 %v680, %v958
        %v1023 = vadd.f32 %v682, %v959
        %v1024 = vadd.f32 %v684, %v960
        %v1025 = vadd.f32 %v686, %v961
        %v1026 = vadd.f32 %v690, %v962
        %v1027 = vadd.f32 %v692, %v963
        %v1028 = vadd.f32 %v694, %v964
        %v1029 = vadd.f32 %v696, %v965
        %v1030 = vadd.f32 %v700, %v966
        %v1031 = vadd.f32 %v702, %v967
        %v1032 = vadd.f32 %v704, %v968
        %v1033 = vadd.f32 %v706, %v969
        %v1034 = vadd.f32 %v710, %v970
        %v1035 = vadd.f32 %v712, %v971
        %v1036 = vadd.f32 %v714, %v972
        %v1037 = vadd.f32 %v716, %v973
        %v1038 = vmul.f32 %v974, 0.7978846
        %v1039 = vmul.f32 %v975, 0.7978846
        %v1040 = vmul.f32 %v976, 0.7978846
        %v1041 = vmul.f32 %v977, 0.7978846
        %v1042 = vmul.f32 %v978, 0.7978846
        %v1043 = vmul.f32 %v979, 0.7978846
        %v1044 = vmul.f32 %v980, 0.7978846
        %v1045 = vmul.f32 %v981, 0.7978846
        %v1046 = vmul.f32 %v982, 0.7978846
        %v1047 = vmul.f32 %v983, 0.7978846
        %v1048 = vmul.f32 %v984, 0.7978846
        %v1049 = vmul.f32 %v985, 0.7978846
        %v1050 = vmul.f32 %v986, 0.7978846
        %v1051 = vmul.f32 %v987, 0.7978846
        %v1052 = vmul.f32 %v988, 0.7978846
        %v1053 = vmul.f32 %v989, 0.7978846
        %v1054 = vmul.f32 %v990, 0.7978846
        %v1055 = vmul.f32 %v991, 0.7978846
        %v1056 = vmul.f32 %v992, 0.7978846
        %v1057 = vmul.f32 %v993, 0.7978846
        %v1058 = vmul.f32 %v994, 0.7978846
        %v1059 = vmul.f32 %v995, 0.7978846
        %v1060 = vmul.f32 %v996, 0.7978846
        %v1061 = vmul.f32 %v997, 0.7978846
        %v1062 = vmul.f32 %v998, 0.7978846
        %v1063 = vmul.f32 %v999, 0.7978846
        %v1064 = vmul.f32 %v1000, 0.7978846
        %v1065 = vmul.f32 %v1001, 0.7978846
        %v1066 = vmul.f32 %v1002, 0.7978846
        %v1067 = vmul.f32 %v1003, 0.7978846
        %v1068 = vmul.f32 %v1004, 0.7978846
        %v1069 = vmul.f32 %v1005, 0.7978846
        %v1070 = vmul.f32 %v1006, 0.7978846
        %v1071 = vmul.f32 %v1007, 0.7978846
        %v1072 = vmul.f32 %v1008, 0.7978846
        %v1073 = vmul.f32 %v1009, 0.7978846
        %v1074 = vmul.f32 %v1010, 0.7978846
        %v1075 = vmul.f32 %v1011, 0.7978846
        %v1076 = vmul.f32 %v1012, 0.7978846
        %v1077 = vmul.f32 %v1013, 0.7978846
        %v1078 = vmul.f32 %v1014, 0.7978846
        %v1079 = vmul.f32 %v1015, 0.7978846
        %v1080 = vmul.f32 %v1016, 0.7978846
        %v1081 = vmul.f32 %v1017, 0.7978846
        %v1082 = vmul.f32 %v1018, 0.7978846
        %v1083 = vmul.f32 %v1019, 0.7978846
        %v1084 = vmul.f32 %v1020, 0.7978846
        %v1085 = vmul.f32 %v1021, 0.7978846
        %v1086 = vmul.f32 %v1022, 0.7978846
        %v1087 = vmul.f32 %v1023, 0.7978846
        %v1088 = vmul.f32 %v1024, 0.7978846
        %v1089 = vmul.f32 %v1025, 0.7978846
        %v1090 = vmul.f32 %v1026, 0.7978846
        %v1091 = vmul.f32 %v1027, 0.7978846
        %v1092 = vmul.f32 %v1028, 0.7978846
        %v1093 = vmul.f32 %v1029, 0.7978846
        %v1094 = vmul.f32 %v1030, 0.7978846
        %v1095 = vmul.f32 %v1031, 0.7978846
        %v1096 = vmul.f32 %v1032, 0.7978846
        %v1097 = vmul.f32 %v1033, 0.7978846
        %v1098 = vmul.f32 %v1034, 0.7978846
        %v1099 = vmul.f32 %v1035, 0.7978846
        %v1100 = vmul.f32 %v1036, 0.7978846
        %v1101 = vmul.f32 %v1037, 0.7978846
        %v1102 = vtanh.pop %v1038
        %v1103 = vtanh.pop %v1039
        %v1104 = vtanh.pop %v1040
        %v1105 = vtanh.pop %v1041
        %v1106 = vtanh.pop %v1042
        %v1107 = vtanh.pop %v1043
        %v1108 = vtanh.pop %v1044
        %v1109 = vtanh.pop %v1045
        %v1110 = vtanh.pop %v1046
        %v1111 = vtanh.pop %v1047
        %v1112 = vtanh.pop %v1048
        %v1113 = vtanh.pop %v1049
        %v1114 = vtanh.pop %v1050
        %v1115 = vtanh.pop %v1051
        %v1116 = vtanh.pop %v1052
        %v1117 = vtanh.pop %v1053
        %v1118 = vtanh.pop %v1054
        %v1119 = vtanh.pop %v1055
        %v1120 = vtanh.pop %v1056
        %v1121 = vtanh.pop %v1057
        %v1122 = vtanh.pop %v1058
        %v1123 = vtanh.pop %v1059
        %v1124 = vtanh.pop %v1060
        %v1125 = vtanh.pop %v1061
        %v1126 = vtanh.pop %v1062
        %v1127 = vtanh.pop %v1063
        %v1128 = vtanh.pop %v1064
        %v1129 = vtanh.pop %v1065
        %v1130 = vtanh.pop %v1066
        %v1131 = vtanh.pop %v1067
        %v1132 = vtanh.pop %v1068
        %v1133 = vtanh.pop %v1069
        %v1134 = vtanh.pop %v1070
        %v1135 = vtanh.pop %v1071
        %v1136 = vtanh.pop %v1072
        %v1137 = vtanh.pop %v1073
        %v1138 = vtanh.pop %v1074
        %v1139 = vtanh.pop %v1075
        %v1140 = vtanh.pop %v1076
        %v1141 = vtanh.pop %v1077
        %v1142 = vtanh.pop %v1078
        %v1143 = vtanh.pop %v1079
        %v1144 = vtanh.pop %v1080
        %v1145 = vtanh.pop %v1081
        %v1146 = vtanh.pop %v1082
        %v1147 = vtanh.pop %v1083
        %v1148 = vtanh.pop %v1084
        %v1149 = vtanh.pop %v1085
        %v1150 = vtanh.pop %v1086
        %v1151 = vtanh.pop %v1087
        %v1152 = vtanh.pop %v1088
        %v1153 = vtanh.pop %v1089
        %v1154 = vtanh.pop %v1090
        %v1155 = vtanh.pop %v1091
        %v1156 = vtanh.pop %v1092
        %v1157 = vtanh.pop %v1093
        %v1158 = vtanh.pop %v1094
        %v1159 = vtanh.pop %v1095
        %v1160 = vtanh.pop %v1096
        %v1161 = vtanh.pop %v1097
        %v1162 = vtanh.pop %v1098
        %v1163 = vtanh.pop %v1099
        %v1164 = vtanh.pop %v1100
        %v1165 = vtanh.pop %v1101
        %v1166 = vadd.f32 %v1102, 1.0
        %v1167 = vadd.f32 %v1103, 1.0
        %v1168 = vadd.f32 %v1104, 1.0
        %v1169 = vadd.f32 %v1105, 1.0
        %v1170 = vadd.f32 %v1106, 1.0
        %v1171 = vadd.f32 %v1107, 1.0
        %v1172 = vadd.f32 %v1108, 1.0
        %v1173 = vadd.f32 %v1109, 1.0
        %v1174 = vadd.f32 %v1110, 1.0
        %v1175 = vadd.f32 %v1111, 1.0
        %v1176 = vadd.f32 %v1112, 1.0
        %v1177 = vadd.f32 %v1113, 1.0
        %v1178 = vadd.f32 %v1114, 1.0
        %v1179 = vadd.f32 %v1115, 1.0
        %v1180 = vadd.f32 %v1116, 1.0
        %v1181 = vadd.f32 %v1117, 1.0
        %v1182 = vadd.f32 %v1118, 1.0
        %v1183 = vadd.f32 %v1119, 1.0
        %v1184 = vadd.f32 %v1120, 1.0
        %v1185 = vadd.f32 %v1121, 1.0
        %v1186 = vadd.f32 %v1122, 1.0
        %v1187 = vadd.f32 %v1123, 1.0
        %v1188 = vadd.f32 %v1124, 1.0
        %v1189 = vadd.f32 %v1125, 1.0
        %v1190 = vadd.f32 %v1126, 1.0
        %v1191 = vadd.f32 %v1127, 1.0
        %v1192 = vadd.f32 %v1128, 1.0
        %v1193 = vadd.f32 %v1129, 1.0
        %v1194 = vadd.f32 %v1130, 1.0
        %v1195 = vadd.f32 %v1131, 1.0
        %v1196 = vadd.f32 %v1132, 1.0
        %v1197 = vadd.f32 %v1133, 1.0
        %v1198 = vadd.f32 %v1134, 1.0
        %v1199 = vadd.f32 %v1135, 1.0
        %v1200 = vadd.f32 %v1136, 1.0
        %v1201 = vadd.f32 %v1137, 1.0
        %v1202 = vadd.f32 %v1138, 1.0
        %v1203 = vadd.f32 %v1139, 1.0
        %v1204 = vadd.f32 %v1140, 1.0
        %v1205 = vadd.f32 %v1141, 1.0
        %v1206 = vadd.f32 %v1142, 1.0
        %v1207 = vadd.f32 %v1143, 1.0
        %v1208 = vadd.f32 %v1144, 1.0
        %v1209 = vadd.f32 %v1145, 1.0
        %v1210 = vadd.f32 %v1146, 1.0
        %v1211 = vadd.f32 %v1147, 1.0
        %v1212 = vadd.f32 %v1148, 1.0
        %v1213 = vadd.f32 %v1149, 1.0
        %v1214 = vadd.f32 %v1150, 1.0
        %v1215 = vadd.f32 %v1151, 1.0
        %v1216 = vadd.f32 %v1152, 1.0
        %v1217 = vadd.f32 %v1153, 1.0
        %v1218 = vadd.f32 %v1154, 1.0
        %v1219 = vadd.f32 %v1155, 1.0
        %v1220 = vadd.f32 %v1156, 1.0
        %v1221 = vadd.f32 %v1157, 1.0
        %v1222 = vadd.f32 %v1158, 1.0
        %v1223 = vadd.f32 %v1159, 1.0
        %v1224 = vadd.f32 %v1160, 1.0
        %v1225 = vadd.f32 %v1161, 1.0
        %v1226 = vadd.f32 %v1162, 1.0
        %v1227 = vadd.f32 %v1163, 1.0
        %v1228 = vadd.f32 %v1164, 1.0
        %v1229 = vadd.f32 %v1165, 1.0
        %v1230 = vmul.f32 %v718, %v1166
        %v1231 = vmul.f32 %v719, %v1167
        %v1232 = vmul.f32 %v720, %v1168
        %v1233 = vmul.f32 %v721, %v1169
        %v1234 = vmul.f32 %v722, %v1170
        %v1235 = vmul.f32 %v723, %v1171
        %v1236 = vmul.f32 %v724, %v1172
        %v1237 = vmul.f32 %v725, %v1173
        %v1238 = vmul.f32 %v726, %v1174
        %v1239 = vmul.f32 %v727, %v1175
        %v1240 = vmul.f32 %v728, %v1176
        %v1241 = vmul.f32 %v729, %v1177
        %v1242 = vmul.f32 %v730, %v1178
        %v1243 = vmul.f32 %v731, %v1179
        %v1244 = vmul.f32 %v732, %v1180
        %v1245 = vmul.f32 %v733, %v1181
        %v1246 = vmul.f32 %v734, %v1182
        %v1247 = vmul.f32 %v735, %v1183
        %v1248 = vmul.f32 %v736, %v1184
        %v1249 = vmul.f32 %v737, %v1185
        %v1250 = vmul.f32 %v738, %v1186
        %v1251 = vmul.f32 %v739, %v1187
        %v1252 = vmul.f32 %v740, %v1188
        %v1253 = vmul.f32 %v741, %v1189
        %v1254 = vmul.f32 %v742, %v1190
        %v1255 = vmul.f32 %v743, %v1191
        %v1256 = vmul.f32 %v744, %v1192
        %v1257 = vmul.f32 %v745, %v1193
        %v1258 = vmul.f32 %v746, %v1194
        %v1259 = vmul.f32 %v747, %v1195
        %v1260 = vmul.f32 %v748, %v1196
        %v1261 = vmul.f32 %v749, %v1197
        %v1262 = vmul.f32 %v750, %v1198
        %v1263 = vmul.f32 %v751, %v1199
        %v1264 = vmul.f32 %v752, %v1200
        %v1265 = vmul.f32 %v753, %v1201
        %v1266 = vmul.f32 %v754, %v1202
        %v1267 = vmul.f32 %v755, %v1203
        %v1268 = vmul.f32 %v756, %v1204
        %v1269 = vmul.f32 %v757, %v1205
        %v1270 = vmul.f32 %v758, %v1206
        %v1271 = vmul.f32 %v759, %v1207
        %v1272 = vmul.f32 %v760, %v1208
        %v1273 = vmul.f32 %v761, %v1209
        %v1274 = vmul.f32 %v762, %v1210
        %v1275 = vmul.f32 %v763, %v1211
        %v1276 = vmul.f32 %v764, %v1212
        %v1277 = vmul.f32 %v765, %v1213
        %v1278 = vmul.f32 %v766, %v1214
        %v1279 = vmul.f32 %v767, %v1215
        %v1280 = vmul.f32 %v768, %v1216
        %v1281 = vmul.f32 %v769, %v1217
        %v1282 = vmul.f32 %v770, %v1218
        %v1283 = vmul.f32 %v771, %v1219
        %v1284 = vmul.f32 %v772, %v1220
        %v1285 = vmul.f32 %v773, %v1221
        %v1286 = vmul.f32 %v774, %v1222
        %v1287 = vmul.f32 %v775, %v1223
        %v1288 = vmul.f32 %v776, %v1224
        %v1289 = vmul.f32 %v777, %v1225
        %v1290 = vmul.f32 %v778, %v1226
        %v1291 = vmul.f32 %v779, %v1227
        %v1292 = vmul.f32 %v780, %v1228
        %v1293 = vmul.f32 %v781, %v1229
        %v1294 = vpack.c.bf16 %v1232, %v1230
        %v1295 = vpack.c.bf16 %v1233, %v1231
        %v1296 = vpack.c.bf16 %v1236, %v1234
        %v1297 = vpack.c.bf16 %v1237, %v1235
        %v1298 = vpack.c.bf16 %v1240, %v1238
        %v1299 = vpack.c.bf16 %v1241, %v1239
        %v1300 = vpack.c.bf16 %v1244, %v1242
        %v1301 = vpack.c.bf16 %v1245, %v1243
        %v1302 = vpack.c.bf16 %v1248, %v1246
        %v1303 = vpack.c.bf16 %v1249, %v1247
        %v1304 = vpack.c.bf16 %v1252, %v1250
        %v1305 = vpack.c.bf16 %v1253, %v1251
        %v1306 = vpack.c.bf16 %v1256, %v1254
        %v1307 = vpack.c.bf16 %v1257, %v1255
        %v1308 = vpack.c.bf16 %v1260, %v1258
        %v1309 = vpack.c.bf16 %v1261, %v1259
        %v1310 = vpack.c.bf16 %v1264, %v1262
        %v1311 = vpack.c.bf16 %v1265, %v1263
        %v1312 = vpack.c.bf16 %v1268, %v1266
        %v1313 = vpack.c.bf16 %v1269, %v1267
        %v1314 = vpack.c.bf16 %v1272, %v1270
        %v1315 = vpack.c.bf16 %v1273, %v1271
        %v1316 = vpack.c.bf16 %v1276, %v1274
        %v1317 = vpack.c.bf16 %v1277, %v1275
        %v1318 = vpack.c.bf16 %v1280, %v1278
        %v1319 = vpack.c.bf16 %v1281, %v1279
        %v1320 = vpack.c.bf16 %v1284, %v1282
        %v1321 = vpack.c.bf16 %v1285, %v1283
        %v1322 = vpack.c.bf16 %v1288, %v1286
        %v1323 = vpack.c.bf16 %v1289, %v1287
        %v1324 = vpack.c.bf16 %v1292, %v1290
        %v1325 = vpack.c.bf16 %v1293, %v1291
        %v1326 = vld [vmem:[#allocation7] sm:$0xf]
        %v1327 = vld [vmem:[#allocation7 + $0x4] sm:$0xf]
        %v1328 = vld [vmem:[#allocation7 + $0x8] sm:$0xf]
        %v1329 = vld [vmem:[#allocation7 + $0xc] sm:$0xf]
        %v1330 = vld [vmem:[#allocation7 + $0x10] sm:$0xf]
        %v1331 = vld [vmem:[#allocation7 + $0x14] sm:$0xf]
        %v1332 = vld [vmem:[#allocation7 + $0x18] sm:$0xf]
        %v1333 = vld [vmem:[#allocation7 + $0x1c] sm:$0xf]
        %v1334 = vld [vmem:[#allocation7 + $0x20] sm:$0xf]
        %v1335 = vld [vmem:[#allocation7 + $0x24] sm:$0xf]
        %v1336 = vld [vmem:[#allocation7 + $0x28] sm:$0xf]
        %v1337 = vld [vmem:[#allocation7 + $0x2c] sm:$0xf]
        %v1338 = vld [vmem:[#allocation7 + $0x30] sm:$0xf]
        %v1339 = vld [vmem:[#allocation7 + $0x34] sm:$0xf]
        %v1340 = vld [vmem:[#allocation7 + $0x38] sm:$0xf]
        %v1341 = vld [vmem:[#allocation7 + $0x3c] sm:$0xf]
        %v1342 = vld [vmem:[#allocation7 + $0x40] sm:$0xf]
        %v1343 = vld [vmem:[#allocation7 + $0x44] sm:$0xf]
        %v1344 = vld [vmem:[#allocation7 + $0x48] sm:$0xf]
        %v1345 = vld [vmem:[#allocation7 + $0x4c] sm:$0xf]
        %v1346 = vld [vmem:[#allocation7 + $0x50] sm:$0xf]
        %v1347 = vld [vmem:[#allocation7 + $0x54] sm:$0xf]
        %v1348 = vld [vmem:[#allocation7 + $0x58] sm:$0xf]
        %v1349 = vld [vmem:[#allocation7 + $0x5c] sm:$0xf]
        %v1350 = vld [vmem:[#allocation7 + $0x60] sm:$0xf]
        %v1351 = vld [vmem:[#allocation7 + $0x64] sm:$0xf]
        %v1352 = vld [vmem:[#allocation7 + $0x68] sm:$0xf]
        %v1353 = vld [vmem:[#allocation7 + $0x6c] sm:$0xf]
        %v1354 = vld [vmem:[#allocation7 + $0x70] sm:$0xf]
        %v1355 = vld [vmem:[#allocation7 + $0x74] sm:$0xf]
        %v1356 = vld [vmem:[#allocation7 + $0x78] sm:$0xf]
        %v1357 = vld [vmem:[#allocation7 + $0x7c] sm:$0xf]
        %v1358 = vld [vmem:[%s4] sm:$0x1]
        %v1360 = vlaneseq
        %v1361 = vshrl.u32 %v1360, 7
        %v1362 = vsub.s32 0, %v1361
        %v1363 = vrot.slane %v1358, %v1362
        %v1397 = vunpack.c.l.b16 %v1326
        %v1398 = vunpack.c.l.b16 %v1327
        %v1399 = vunpack.c.l.b16 %v1328
        %v1400 = vunpack.c.l.b16 %v1329
        %v1401 = vunpack.c.l.b16 %v1330
        %v1402 = vunpack.c.l.b16 %v1331
        %v1403 = vunpack.c.l.b16 %v1332
        %v1404 = vunpack.c.l.b16 %v1333
        %v1405 = vunpack.c.l.b16 %v1334
        %v1406 = vunpack.c.l.b16 %v1335
        %v1407 = vunpack.c.l.b16 %v1336
        %v1408 = vunpack.c.l.b16 %v1337
        %v1409 = vunpack.c.l.b16 %v1338
        %v1410 = vunpack.c.l.b16 %v1339
        %v1411 = vunpack.c.l.b16 %v1340
        %v1412 = vunpack.c.l.b16 %v1341
        %v1413 = vunpack.c.l.b16 %v1342
        %v1414 = vunpack.c.l.b16 %v1343
        %v1415 = vunpack.c.l.b16 %v1344
        %v1416 = vunpack.c.l.b16 %v1345
        %v1417 = vunpack.c.l.b16 %v1346
        %v1418 = vunpack.c.l.b16 %v1347
        %v1419 = vunpack.c.l.b16 %v1348
        %v1420 = vunpack.c.l.b16 %v1349
        %v1421 = vunpack.c.l.b16 %v1350
        %v1422 = vunpack.c.l.b16 %v1351
        %v1423 = vunpack.c.l.b16 %v1352
        %v1424 = vunpack.c.l.b16 %v1353
        %v1425 = vunpack.c.l.b16 %v1354
        %v1426 = vunpack.c.l.b16 %v1355
        %v1427 = vunpack.c.l.b16 %v1356
        %v1428 = vunpack.c.l.b16 %v1357
        %v1429 = vpack.c.b16 %v1398, %v1397
        %v1430 = vpack.c.b16 %v1400, %v1399
        %v1431 = vpack.c.b16 %v1402, %v1401
        %v1432 = vpack.c.b16 %v1404, %v1403
        %v1433 = vpack.c.b16 %v1406, %v1405
        %v1434 = vpack.c.b16 %v1408, %v1407
        %v1435 = vpack.c.b16 %v1410, %v1409
        %v1436 = vpack.c.b16 %v1412, %v1411
        %v1437 = vpack.c.b16 %v1414, %v1413
        %v1438 = vpack.c.b16 %v1416, %v1415
        %v1439 = vpack.c.b16 %v1418, %v1417
        %v1440 = vpack.c.b16 %v1420, %v1419
        %v1441 = vpack.c.b16 %v1422, %v1421
        %v1442 = vpack.c.b16 %v1424, %v1423
        %v1443 = vpack.c.b16 %v1426, %v1425
        %v1444 = vpack.c.b16 %v1428, %v1427
        %1461 = vmatprep.subr.bf16.mxu0 0
        %1462 = vmatpush1.bf16.msra.mxu0 %v1436
        %1463 = vmatprep.subr.bf16.mxu0 0
        %1464 = vmatpush1.bf16.msra.mxu0 %v1435
        %1465 = vmatprep.subr.bf16.mxu0 0
        %1466 = vmatpush1.bf16.msra.mxu0 %v1434
        %1467 = vmatprep.subr.bf16.mxu0 0
        %1468 = vmatpush1.bf16.msra.mxu0 %v1433
        %1469 = vmatprep.subr.bf16.mxu0 0
        %1470 = vmatpush1.bf16.msra.mxu0 %v1432
        %1471 = vmatprep.subr.bf16.mxu0 0
        %1472 = vmatpush1.bf16.msra.mxu0 %v1431
        %1473 = vmatprep.subr.bf16.mxu0 0
        %1474 = vmatpush1.bf16.msra.mxu0 %v1430
        %1475 = vmatprep.subr.bf16.mxu0 0
        %1476 = vmatpush1.bf16.msra.mxu0 %v1429
        %1477 = vmatprep.subr.bf16.mxu0 0
        %1478 = vmatpush2.bf16.msra.mxu0 %v1444
        %1479 = vmatprep.subr.bf16.mxu0 0
        %1480 = vmatpush2.bf16.msra.mxu0 %v1443
        %1481 = vmatprep.subr.bf16.mxu0 0
        %1482 = vmatpush2.bf16.msra.mxu0 %v1442
        %1483 = vmatprep.subr.bf16.mxu0 0
        %1484 = vmatpush2.bf16.msra.mxu0 %v1441
        %1485 = vmatprep.subr.bf16.mxu0 0
        %1486 = vmatpush2.bf16.msra.mxu0 %v1440
        %1487 = vmatprep.subr.bf16.mxu0 0
        %1488 = vmatpush2.bf16.msra.mxu0 %v1439
        %1489 = vmatprep.subr.bf16.mxu0 0
        %1490 = vmatpush2.bf16.msra.mxu0 %v1438
        %1491 = vmatprep.subr.bf16.mxu0 0
        %1492 = vmatpush2.bf16.msra.mxu0 %v1437
        %1493 = vmatprep.mubr.bf16.mxu0 %v1295
        %1494 = vmatmul.mubr.bf16.gmra.mxu0 %v1294
        %v1495 = vpop.f32.mrf.mxu0
        %v1496 = vadd.f32 %v1363, %v1495
        %v1497 = vpop.f32.mrf.mxu0
        %v1498 = vpop.f32.mrf.mxu0
        %v1499 = vadd.f32 %v1363, %v1498
        %v1500 = vpop.f32.mrf.mxu0
        %1501 = vmatprep.mubr.bf16.mxu0 %v1297
        %1502 = vmatmul.mubr.bf16.gmra.mxu0 %v1296
        %v1503 = vpop.f32.mrf.mxu0
        %v1504 = vadd.f32 %v1363, %v1503
        %v1505 = vpop.f32.mrf.mxu0
        %v1506 = vpop.f32.mrf.mxu0
        %v1507 = vadd.f32 %v1363, %v1506
        %v1508 = vpop.f32.mrf.mxu0
        %1509 = vmatprep.mubr.bf16.mxu0 %v1299
        %1510 = vmatmul.mubr.bf16.gmra.mxu0 %v1298
        %v1511 = vpop.f32.mrf.mxu0
        %v1512 = vadd.f32 %v1363, %v1511
        %v1513 = vpop.f32.mrf.mxu0
        %v1514 = vpop.f32.mrf.mxu0
        %v1515 = vadd.f32 %v1363, %v1514
        %v1516 = vpop.f32.mrf.mxu0
        %1517 = vmatprep.mubr.bf16.mxu0 %v1301
        %1518 = vmatmul.mubr.bf16.gmra.mxu0 %v1300
        %v1519 = vpop.f32.mrf.mxu0
        %v1520 = vadd.f32 %v1363, %v1519
        %v1521 = vpop.f32.mrf.mxu0
        %v1522 = vpop.f32.mrf.mxu0
        %v1523 = vadd.f32 %v1363, %v1522
        %v1524 = vpop.f32.mrf.mxu0
        %1525 = vmatprep.mubr.bf16.mxu0 %v1303
        %1526 = vmatmul.mubr.bf16.gmra.mxu0 %v1302
        %v1527 = vpop.f32.mrf.mxu0
        %v1528 = vadd.f32 %v1363, %v1527
        %v1529 = vpop.f32.mrf.mxu0
        %v1530 = vpop.f32.mrf.mxu0
        %v1531 = vadd.f32 %v1363, %v1530
        %v1532 = vpop.f32.mrf.mxu0
        %1533 = vmatprep.mubr.bf16.mxu0 %v1305
        %1534 = vmatmul.mubr.bf16.gmra.mxu0 %v1304
        %v1535 = vpop.f32.mrf.mxu0
        %v1536 = vadd.f32 %v1363, %v1535
        %v1537 = vpop.f32.mrf.mxu0
        %v1538 = vpop.f32.mrf.mxu0
        %v1539 = vadd.f32 %v1363, %v1538
        %v1540 = vpop.f32.mrf.mxu0
        %1541 = vmatprep.mubr.bf16.mxu0 %v1307
        %1542 = vmatmul.mubr.bf16.gmra.mxu0 %v1306
        %v1543 = vpop.f32.mrf.mxu0
        %v1544 = vadd.f32 %v1363, %v1543
        %v1545 = vpop.f32.mrf.mxu0
        %v1546 = vpop.f32.mrf.mxu0
        %v1547 = vadd.f32 %v1363, %v1546
        %v1548 = vpop.f32.mrf.mxu0
        %1549 = vmatprep.mubr.bf16.mxu0 %v1309
        %1550 = vmatmul.mubr.bf16.gmra.mxu0 %v1308
        %v1551 = vpop.f32.mrf.mxu0
        %v1552 = vadd.f32 %v1363, %v1551
        %v1553 = vpop.f32.mrf.mxu0
        %v1554 = vpop.f32.mrf.mxu0
        %v1555 = vadd.f32 %v1363, %v1554
        %v1556 = vpop.f32.mrf.mxu0
        %1557 = vmatprep.mubr.bf16.mxu0 %v1311
        %1558 = vmatmul.mubr.bf16.gmra.mxu0 %v1310
        %v1559 = vpop.f32.mrf.mxu0
        %v1560 = vadd.f32 %v1363, %v1559
        %v1561 = vpop.f32.mrf.mxu0
        %v1562 = vpop.f32.mrf.mxu0
        %v1563 = vadd.f32 %v1363, %v1562
        %v1564 = vpop.f32.mrf.mxu0
        %1565 = vmatprep.mubr.bf16.mxu0 %v1313
        %1566 = vmatmul.mubr.bf16.gmra.mxu0 %v1312
        %v1567 = vpop.f32.mrf.mxu0
        %v1568 = vadd.f32 %v1363, %v1567
        %v1569 = vpop.f32.mrf.mxu0
        %v1570 = vpop.f32.mrf.mxu0
        %v1571 = vadd.f32 %v1363, %v1570
        %v1572 = vpop.f32.mrf.mxu0
        %1573 = vmatprep.mubr.bf16.mxu0 %v1315
        %1574 = vmatmul.mubr.bf16.gmra.mxu0 %v1314
        %v1575 = vpop.f32.mrf.mxu0
        %v1576 = vadd.f32 %v1363, %v1575
        %v1577 = vpop.f32.mrf.mxu0
        %v1578 = vpop.f32.mrf.mxu0
        %v1579 = vadd.f32 %v1363, %v1578
        %v1580 = vpop.f32.mrf.mxu0
        %1581 = vmatprep.mubr.bf16.mxu0 %v1317
        %1582 = vmatmul.mubr.bf16.gmra.mxu0 %v1316
        %v1583 = vpop.f32.mrf.mxu0
        %v1584 = vadd.f32 %v1363, %v1583
        %v1585 = vpop.f32.mrf.mxu0
        %v1586 = vpop.f32.mrf.mxu0
        %v1587 = vadd.f32 %v1363, %v1586
        %v1588 = vpop.f32.mrf.mxu0
        %1589 = vmatprep.mubr.bf16.mxu0 %v1319
        %1590 = vmatmul.mubr.bf16.gmra.mxu0 %v1318
        %v1591 = vpop.f32.mrf.mxu0
        %v1592 = vadd.f32 %v1363, %v1591
        %v1593 = vpop.f32.mrf.mxu0
        %v1594 = vpop.f32.mrf.mxu0
        %v1595 = vadd.f32 %v1363, %v1594
        %v1596 = vpop.f32.mrf.mxu0
        %1597 = vmatprep.mubr.bf16.mxu0 %v1321
        %1598 = vmatmul.mubr.bf16.gmra.mxu0 %v1320
        %v1599 = vpop.f32.mrf.mxu0
        %v1600 = vadd.f32 %v1363, %v1599
        %v1601 = vpop.f32.mrf.mxu0
        %v1602 = vpop.f32.mrf.mxu0
        %v1603 = vadd.f32 %v1363, %v1602
        %v1604 = vpop.f32.mrf.mxu0
        %1605 = vmatprep.mubr.bf16.mxu0 %v1323
        %1606 = vmatmul.mubr.bf16.gmra.mxu0 %v1322
        %v1607 = vpop.f32.mrf.mxu0
        %v1608 = vadd.f32 %v1363, %v1607
        %v1609 = vpop.f32.mrf.mxu0
        %v1610 = vpop.f32.mrf.mxu0
        %v1611 = vadd.f32 %v1363, %v1610
        %v1612 = vpop.f32.mrf.mxu0
        %1613 = vmatprep.mubr.bf16.mxu0 %v1325
        %1614 = vmatmul.mubr.bf16.gmra.mxu0 %v1324
        %v1615 = vpop.f32.mrf.mxu0
        %v1616 = vadd.f32 %v1363, %v1615
        %v1617 = vpop.f32.mrf.mxu0
        %v1618 = vpop.f32.mrf.mxu0
        %v1619 = vadd.f32 %v1363, %v1618
        %v1620 = vpop.f32.mrf.mxu0
        %1621 = vdwg.mxu0
        %v1622 = vunpack.c.l.bf16 %v289
        %v1623 = vunpack.c.l.bf16 %v290
        %v1624 = vunpack.c.l.bf16 %v291
        %v1625 = vunpack.c.l.bf16 %v292
        %v1626 = vunpack.c.l.bf16 %v293
        %v1627 = vunpack.c.l.bf16 %v294
        %v1628 = vunpack.c.l.bf16 %v295
        %v1629 = vunpack.c.l.bf16 %v296
        %v1630 = vunpack.c.l.bf16 %v297
        %v1631 = vunpack.c.l.bf16 %v298
        %v1632 = vunpack.c.l.bf16 %v299
        %v1633 = vunpack.c.l.bf16 %v300
        %v1634 = vunpack.c.l.bf16 %v301
        %v1635 = vunpack.c.l.bf16 %v302
        %v1636 = vunpack.c.l.bf16 %v303
        %v1637 = vunpack.c.l.bf16 %v304
        %v1638 = vunpack.c.l.bf16 %v305
        %v1639 = vunpack.c.l.bf16 %v306
        %v1640 = vunpack.c.l.bf16 %v307
        %v1641 = vunpack.c.l.bf16 %v308
        %v1642 = vunpack.c.l.bf16 %v309
        %v1643 = vunpack.c.l.bf16 %v310
        %v1644 = vunpack.c.l.bf16 %v311
        %v1645 = vunpack.c.l.bf16 %v312
        %v1646 = vunpack.c.l.bf16 %v313
        %v1647 = vunpack.c.l.bf16 %v314
        %v1648 = vunpack.c.l.bf16 %v315
        %v1649 = vunpack.c.l.bf16 %v316
        %v1650 = vunpack.c.l.bf16 %v317
        %v1651 = vunpack.c.l.bf16 %v318
        %v1652 = vunpack.c.l.bf16 %v319
        %v1653 = vunpack.c.l.bf16 %v320
        %v1654 = vadd.f32 %v1496, %v1622
        %v1655 = vadd.f32 %v1499, %v1623
        %v1656 = vadd.f32 %v1504, %v1624
        %v1657 = vadd.f32 %v1507, %v1625
        %v1658 = vadd.f32 %v1512, %v1626
        %v1659 = vadd.f32 %v1515, %v1627
        %v1660 = vadd.f32 %v1520, %v1628
        %v1661 = vadd.f32 %v1523, %v1629
        %v1662 = vadd.f32 %v1528, %v1630
        %v1663 = vadd.f32 %v1531, %v1631
        %v1664 = vadd.f32 %v1536, %v1632
        %v1665 = vadd.f32 %v1539, %v1633
        %v1666 = vadd.f32 %v1544, %v1634
        %v1667 = vadd.f32 %v1547, %v1635
        %v1668 = vadd.f32 %v1552, %v1636
        %v1669 = vadd.f32 %v1555, %v1637
        %v1670 = vadd.f32 %v1560, %v1638
        %v1671 = vadd.f32 %v1563, %v1639
        %v1672 = vadd.f32 %v1568, %v1640
        %v1673 = vadd.f32 %v1571, %v1641
        %v1674 = vadd.f32 %v1576, %v1642
        %v1675 = vadd.f32 %v1579, %v1643
        %v1676 = vadd.f32 %v1584, %v1644
        %v1677 = vadd.f32 %v1587, %v1645
        %v1678 = vadd.f32 %v1592, %v1646
        %v1679 = vadd.f32 %v1595, %v1647
        %v1680 = vadd.f32 %v1600, %v1648
        %v1681 = vadd.f32 %v1603, %v1649
        %v1682 = vadd.f32 %v1608, %v1650
        %v1683 = vadd.f32 %v1611, %v1651
        %v1684 = vadd.f32 %v1616, %v1652
        %v1685 = vadd.f32 %v1619, %v1653
        %v1686 = vpack.c.bf16 %v1655, %v1654
        %v1687 = vpack.c.bf16 %v1657, %v1656
        %v1688 = vpack.c.bf16 %v1659, %v1658
        %v1689 = vpack.c.bf16 %v1661, %v1660
        %v1690 = vpack.c.bf16 %v1663, %v1662
        %v1691 = vpack.c.bf16 %v1665, %v1664
        %v1692 = vpack.c.bf16 %v1667, %v1666
        %v1693 = vpack.c.bf16 %v1669, %v1668
        %v1694 = vpack.c.bf16 %v1671, %v1670
        %v1695 = vpack.c.bf16 %v1673, %v1672
        %v1696 = vpack.c.bf16 %v1675, %v1674
        %v1697 = vpack.c.bf16 %v1677, %v1676
        %v1698 = vpack.c.bf16 %v1679, %v1678
        %v1699 = vpack.c.bf16 %v1681, %v1680
        %v1700 = vpack.c.bf16 %v1683, %v1682
        %v1701 = vpack.c.bf16 %v1685, %v1684
        %v1718 = vunpack.c.l.b16 %v1686
        %v1719 = vunpack.c.h.b16 %v1686
        %v1720 = vunpack.c.l.b16 %v1687
        %v1721 = vunpack.c.h.b16 %v1687
        %v1722 = vunpack.c.l.b16 %v1688
        %v1723 = vunpack.c.h.b16 %v1688
        %v1724 = vunpack.c.l.b16 %v1689
        %v1725 = vunpack.c.h.b16 %v1689
        %v1726 = vunpack.c.l.b16 %v1690
        %v1727 = vunpack.c.h.b16 %v1690
        %v1728 = vunpack.c.l.b16 %v1691
        %v1729 = vunpack.c.h.b16 %v1691
        %v1730 = vunpack.c.l.b16 %v1692
        %v1731 = vunpack.c.h.b16 %v1692
        %v1732 = vunpack.c.l.b16 %v1693
        %v1733 = vunpack.c.h.b16 %v1693
        %v1734 = vunpack.c.l.b16 %v1694
        %v1735 = vunpack.c.h.b16 %v1694
        %v1736 = vunpack.c.l.b16 %v1695
        %v1737 = vunpack.c.h.b16 %v1695
        %v1738 = vunpack.c.l.b16 %v1696
        %v1739 = vunpack.c.h.b16 %v1696
        %v1740 = vunpack.c.l.b16 %v1697
        %v1741 = vunpack.c.h.b16 %v1697
        %v1742 = vunpack.c.l.b16 %v1698
        %v1743 = vunpack.c.h.b16 %v1698
        %v1744 = vunpack.c.l.b16 %v1699
        %v1745 = vunpack.c.h.b16 %v1699
        %v1746 = vunpack.c.l.b16 %v1700
        %v1747 = vunpack.c.h.b16 %v1700
        %v1748 = vunpack.c.l.b16 %v1701
        %v1749 = vunpack.c.h.b16 %v1701
        %v1750 = vpack.c.b16 %v1718, %v1718
        %v1751 = vpack.c.b16 %v1719, %v1719
        %v1752 = vpack.c.b16 %v1720, %v1720
        %v1753 = vpack.c.b16 %v1721, %v1721
        %v1754 = vpack.c.b16 %v1722, %v1722
        %v1755 = vpack.c.b16 %v1723, %v1723
        %v1756 = vpack.c.b16 %v1724, %v1724
        %v1757 = vpack.c.b16 %v1725, %v1725
        %v1758 = vpack.c.b16 %v1726, %v1726
        %v1759 = vpack.c.b16 %v1727, %v1727
        %v1760 = vpack.c.b16 %v1728, %v1728
        %v1761 = vpack.c.b16 %v1729, %v1729
        %v1762 = vpack.c.b16 %v1730, %v1730
        %v1763 = vpack.c.b16 %v1731, %v1731
        %v1764 = vpack.c.b16 %v1732, %v1732
        %v1765 = vpack.c.b16 %v1733, %v1733
        %v1766 = vpack.c.b16 %v1734, %v1734
        %v1767 = vpack.c.b16 %v1735, %v1735
        %v1768 = vpack.c.b16 %v1736, %v1736
        %v1769 = vpack.c.b16 %v1737, %v1737
        %v1770 = vpack.c.b16 %v1738, %v1738
        %v1771 = vpack.c.b16 %v1739, %v1739
        %v1772 = vpack.c.b16 %v1740, %v1740
        %v1773 = vpack.c.b16 %v1741, %v1741
        %v1774 = vpack.c.b16 %v1742, %v1742
        %v1775 = vpack.c.b16 %v1743, %v1743
        %v1776 = vpack.c.b16 %v1744, %v1744
        %v1777 = vpack.c.b16 %v1745, %v1745
        %v1778 = vpack.c.b16 %v1746, %v1746
        %v1779 = vpack.c.b16 %v1747, %v1747
        %v1780 = vpack.c.b16 %v1748, %v1748
        %v1781 = vpack.c.b16 %v1749, %v1749
        %1814 = vst [vmem:[%s277] sm:$0xf] %v1750
        %1815 = vst [vmem:[%s277 + $0x4] sm:$0xf] %v1751
        %1816 = vst [vmem:[%s277 + $0x8] sm:$0xf] %v1752
        %1817 = vst [vmem:[%s277 + $0xc] sm:$0xf] %v1753
        %1818 = vst [vmem:[%s277 + $0x10] sm:$0xf] %v1754
        %1819 = vst [vmem:[%s277 + $0x14] sm:$0xf] %v1755
        %1820 = vst [vmem:[%s277 + $0x18] sm:$0xf] %v1756
        %1821 = vst [vmem:[%s277 + $0x1c] sm:$0xf] %v1757
        %1822 = vst [vmem:[%s277 + $0x20] sm:$0xf] %v1758
        %1823 = vst [vmem:[%s277 + $0x24] sm:$0xf] %v1759
        %1824 = vst [vmem:[%s277 + $0x28] sm:$0xf] %v1760
        %1825 = vst [vmem:[%s277 + $0x2c] sm:$0xf] %v1761
        %1826 = vst [vmem:[%s277 + $0x30] sm:$0xf] %v1762
        %1827 = vst [vmem:[%s277 + $0x34] sm:$0xf] %v1763
        %1828 = vst [vmem:[%s277 + $0x38] sm:$0xf] %v1764
        %1829 = vst [vmem:[%s277 + $0x3c] sm:$0xf] %v1765
        %1830 = vst [vmem:[%s277 + $0x40] sm:$0xf] %v1766
        %1831 = vst [vmem:[%s277 + $0x44] sm:$0xf] %v1767
        %1832 = vst [vmem:[%s277 + $0x48] sm:$0xf] %v1768
        %1833 = vst [vmem:[%s277 + $0x4c] sm:$0xf] %v1769
        %1834 = vst [vmem:[%s277 + $0x50] sm:$0xf] %v1770
        %1835 = vst [vmem:[%s277 + $0x54] sm:$0xf] %v1771
        %1836 = vst [vmem:[%s277 + $0x58] sm:$0xf] %v1772
        %1837 = vst [vmem:[%s277 + $0x5c] sm:$0xf] %v1773
        %1838 = vst [vmem:[%s277 + $0x60] sm:$0xf] %v1774
        %1839 = vst [vmem:[%s277 + $0x64] sm:$0xf] %v1775
        %1840 = vst [vmem:[%s277 + $0x68] sm:$0xf] %v1776
        %1841 = vst [vmem:[%s277 + $0x6c] sm:$0xf] %v1777
        %1842 = vst [vmem:[%s277 + $0x70] sm:$0xf] %v1778
        %1843 = vst [vmem:[%s277 + $0x74] sm:$0xf] %v1779
        %1844 = vst [vmem:[%s277 + $0x78] sm:$0xf] %v1780
        %1845 = vst [vmem:[%s277 + $0x7c] sm:$0xf] %v1781
        %s1846 = sand.u32 %s141, 1
        %s1847 = scalar_lea.sflag [#allocation4], %s1846
        %s1848 = sand.u32 %s141, 1
        %s1849 = smul.addr %s1848, 128
        %s1850 = scalar_lea.vmem [#allocation8], %s1849
        // Predicated region
        $region53: #{tpu_custom_call.1} parent=39 // pred_check
          %p1851 = pneg %p151
        $region54: #{tpu_custom_call.1} parent=39 // pred_check_branch
          %1853 = sbr.rel (%p1851) target = $region56
        $region55: #{tpu_custom_call.1} parent=39 // pred_region
          %s1854 = smul.u32 32, %s23
          %s1855 = ssub.s32 50, %s1854
          %p1856 = scmp.lt.s32.totalorder %s1855, 32
          %s1857 = scalar_select %p1856, %s1855, 32
          %s1858 = smul.u32 64, %s1857
          %s1860 = ssub.s32 2048, %s1858
          %1861 = vsyncadd %s1847, %s1860
          %p1862 = scmp.ne.s32.totalorder 0, %s1858
          %s1863 = smul.addr %s1854, 64
          %s1864 = scalar_lea.hbm %s5, %s1863
          %s1865 = smul.u32 4, %s1857
          %s1866 = sshll.u32 %s1850, 4
          %s1867 = int_to_ptr.vmem [resolvable:$true] %s1866
          %s1868 = sshll.u32 %s1865, 4
          %1872 = dma.vmem_to_hbm [thread:$0]  (%p1862), %s1867, %s1868, %s1864, %s1847, 64, 64, 4
        $region56: #{tpu_custom_call.1} parent=39 // pred_fallthru
          _
      $region40: #{tpu_custom_call.1} parent=5 // pred_fallthru
        _
      %p1873 = scmp.le.s32.totalorder 2, %s18
      // Predicated region
      $region57: #{tpu_custom_call.1} parent=5 // pred_check
        %p1874 = pneg %p1873
      $region58: #{tpu_custom_call.1} parent=5 // pred_check_branch
        %1876 = sbr.rel (%p1874) target = $region60
      $region59: #{tpu_custom_call.1} parent=5 // pred_region
        %s1877 = ssub.s32 %s18, 2
        // Predicated region
        $region61: #{tpu_custom_call.1} parent=59 // pred_check
          %p1878 = pneg %p157
        $region62: #{tpu_custom_call.1} parent=59 // pred_check_branch
          %1880 = sbr.rel (%p1878) target = $region64
        $region63: #{tpu_custom_call.1} parent=59 // pred_region
          %s1881 = sand.u32 %s142, 1
          %s1882 = scalar_lea.sflag [#allocation4], %s1881
          %s1883 = sand.u32 %s142, 1
          %s1884 = smul.addr %s1883, 128
          %s1885 = scalar_lea.vmem [#allocation8], %s1884
          %1886 = dma.done %s1882, 2048
        $region64: #{tpu_custom_call.1} parent=59 // pred_fallthru
          _
      $region60: #{tpu_custom_call.1} parent=5 // pred_fallthru
        _
    $region6: #{tpu_custom_call.1} parent=1 // loop_footer
      %s22 = sadd.s32 1, %s18
    $region7: #{tpu_custom_call.1} parent=1 // loop_footer_branch
      %17 = sbr.rel target = $region3
    $region8: #{tpu_custom_call.1} parent=1 // loop_exit
      _
    %1887 = vsyncpa [#allocation3], 1
    %s1888 = scalar_lea.sflag [#allocation3], 1
    %1889 = vsyncpa %s1888, 1
    %1890 = vsyncpa [#allocation6], 1
    %1891 = vsyncpa [#allocation4], 1
    %s1892 = scalar_lea.sflag [#allocation4], 1
    %1893 = vsyncpa %s1892, 1

</llo_original>
